<compile_context>
chip_gen: v7x
topology: tpu7x:2x2x1
jax: 0.10.0
libtpu: 0.0.40
codegen_flags: <defaults>
</compile_context>

<pallas_src>
import math
import jax
import jax.numpy as jnp
from jax import lax
from jax.experimental import pallas as pl
from jax.experimental.pallas import tpu as pltpu


# Padded layer widths (multiples of 128).
D_IN = 128                              # 50 inputs + t (lane 50) + 1.0 (lane 51)
H1, H2, H3 = 512, 384, 256              # 400, 300, 200
D_LAT = 128                             # 3 (stored in lanes 1..3)
D_D1, H5, H6, H7 = 128, 256, 512, 128   # 100, 200, 450, 50
D_OUT = 128                             # 1
T_LANE = 50                             # lane of the input slab carrying t
ONE_LANE = 51                           # lane of the input slab carrying 1.0
SLAB_SHAPE = (8, 512)                   # packed f32 biases


def _round_up(n, m):
    return ((n + m - 1) // m) * m


def _tanh_dtype():
    """bf16 tanh on v6e/v7x (bf16 EUP); f32 on v5e/v5p/v4 and older."""
    try:
        kind = jax.devices()[0].device_kind.lower()
    except Exception:
        return jnp.float32
    for old in ("v2", "v3", "v4", "v5"):
        if old in kind:
            return jnp.float32
    return jnp.bfloat16


# ---------------------------------------------------------------------------
# Kernel: fused encoder -> (project + concat + decoder layer 1 via Wcomb)
#         -> decoder tail, single merged (BM, 128) output.
# ---------------------------------------------------------------------------
def _make_kernel(act_dtype):
    f32, bf16 = jnp.float32, jnp.bfloat16

    def kernel(xt_ref,                                  # (BM, 128) bf16
               we1, we2, we3, we4,                      # encoder weights, bf16
               wcomb,                                   # folded decoder layer 1
               wd2, wd3, wd4, wd5,                      # decoder tail weights
               slab_ref,                                # (8, 512) f32 biases
               out_ref):                                # (BM, 128) f32 merged out
        slab = slab_ref[...]
        be2 = slab[0:1, :H2]
        be3 = slab[1:2, :H3]
        be4 = slab[2:3, :D_LAT]      # real values in lanes 1..3
        bd2 = slab[3:4, :H5]
        bd3 = slab[4:5, :H6]
        bd4 = slab[5:6, :H7]
        bd5 = slab[6:7, :D_OUT]

        def act(pre_f32):
            return jnp.tanh(pre_f32.astype(act_dtype))

        def mm(a, w):
            return jnp.dot(a.astype(bf16), w[...], preferred_element_type=f32)

        xt = xt_ref[...]                                # (BM, 128) bf16

        # encoder: 50 -> 400 -> 300 -> 200 -> 3 (padded); layer-1 bias folded
        h = act(mm(xt, we1))
        h = act(mm(h, we2) + be2)
        h = act(mm(h, we3) + be3)
        enc = act(mm(h, we4) + be4)                     # encoded in lanes 1..3

        # project + concat + decoder layer 1 as one MXU pass:
        #   aux lanes 1..3 = encoded, lane 50 = t, lane 51 = 1.0 (bias carrier)
        lane = lax.broadcasted_iota(jnp.int32, xt.shape, 1)
        keep = (lane == T_LANE) | (lane == ONE_LANE)
        aux = enc + jnp.where(keep, xt.astype(enc.dtype), jnp.zeros_like(enc))
        d = act(mm(aux, wcomb))                         # bias folded into row 51

        # decoder tail: 100 -> 200 -> 450 -> 50 -> 1 (padded)
        d = act(mm(d, wd2) + bd2)
        d = act(mm(d, wd3) + bd3)
        d = act(mm(d, wd4) + bd4)
        dec = mm(d, wd5) + bd5                          # decoded in lane 0

        # merged output: lane 0 = decoded, lanes 1..3 = encoded
        # (both operands are exact zeros outside their live lanes)
        out_ref[...] = (dec + enc.astype(f32)).astype(out_ref.dtype)

    return kernel


# ---------------------------------------------------------------------------
# Host-side packing: pad/quantize weights, fold project + biases, pack biases
# ---------------------------------------------------------------------------
def _pad2d(w, rows, cols, dtype):
    out = jnp.zeros((rows, cols), dtype)
    return out.at[:w.shape[0], :w.shape[1]].set(w.astype(dtype))


def pack_params(params):
    (we1, be1, we2, be2, we3, be3, we4, be4,
     wp, bp, wd1, bd1, wd2, bd2, wd3, bd3, wd4, bd4, wd5, bd5) = params
    bf16, f32 = jnp.bfloat16, jnp.float32
    hi = lax.Precision.HIGHEST

    # encoder layer 1: bias folded into row ONE_LANE (constant-1 input lane);
    # row T_LANE stays zero so t never leaks into the encoder.
    we1p = jnp.zeros((D_IN, H1), bf16)
    we1p = we1p.at[:50, :400].set(we1.astype(bf16))
    we1p = we1p.at[ONE_LANE, :400].set(be1.reshape(-1).astype(bf16))

    we2p = _pad2d(we2, H1, H2, bf16)
    we3p = _pad2d(we3, H2, H3, bf16)

    # encoder layer 4: latent shifted to lanes 1..3 (lane 0 reserved for decoded)
    we4p = jnp.zeros((H3, D_LAT), bf16)
    we4p = we4p.at[:200, 1:4].set(we4.astype(bf16))

    # fold project + concat + decoder layer 1:
    #   cat(enc, t@wp+bp) @ wd1 == enc @ wd1a + t @ (wp@wd1b) + (bd1 + bp@wd1b)
    wd1a = wd1[:3, :]                                    # (3, 100)
    wd1b = wd1[3:, :]                                    # (3, 100)
    wt = jnp.dot(wp, wd1b, precision=hi)                 # (1, 100)
    bd1f = bd1 + jnp.dot(bp, wd1b, precision=hi)         # (1, 100)
    wcomb = jnp.zeros((D_LAT, D_D1), bf16)
    wcomb = wcomb.at[1:4, :100].set(wd1a.astype(bf16))
    wcomb = wcomb.at[T_LANE, :100].set(wt.reshape(-1).astype(bf16))
    wcomb = wcomb.at[ONE_LANE, :100].set(bd1f.reshape(-1).astype(bf16))

    wd2p = _pad2d(wd2, D_D1, H5, bf16)
    wd3p = _pad2d(wd3, H5, H6, bf16)
    wd4p = _pad2d(wd4, H6, H7, bf16)
    wd5p = _pad2d(wd5, H7, D_OUT, bf16)

    slab = jnp.zeros(SLAB_SHAPE, f32)
    slab = slab.at[0, :300].set(be2.reshape(-1).astype(f32))
    slab = slab.at[1, :200].set(be3.reshape(-1).astype(f32))
    slab = slab.at[2, 1:4].set(be4.reshape(-1).astype(f32))
    slab = slab.at[3, :200].set(bd2.reshape(-1).astype(f32))
    slab = slab.at[4, :450].set(bd3.reshape(-1).astype(f32))
    slab = slab.at[5, :50].set(bd4.reshape(-1).astype(f32))
    slab = slab.at[6, 0].set(bd5.reshape(-1).astype(f32)[0])

    return (we1p, we2p, we3p, we4p, wcomb, wd2p, wd3p, wd4p, wd5p, slab)


# ---------------------------------------------------------------------------
# Wrapper: batch grid, weights resident via constant index_map
# ---------------------------------------------------------------------------
def autoencoder_forward(x, t, packed):
    B = x.shape[0]
    # >= 2 grid steps whenever B exceeds one tile (v7x dual-TC), cap tile at 1024
    half = (B + 1) // 2
    BM = min(1024, _round_up(max(half, 8), 16))
    Bp = _round_up(B, BM)

    bf16 = jnp.bfloat16
    xt = jnp.zeros((Bp, D_IN), bf16)
    xt = xt.at[:B, :50].set(x.astype(bf16))
    xt = xt.at[:B, T_LANE].set(t.reshape(-1).astype(bf16))
    xt = xt.at[:B, ONE_LANE].set(jnp.ones((B,), bf16))

    act_dtype = _tanh_dtype()
    kernel = _make_kernel(act_dtype)

    batch_spec = pl.BlockSpec((BM, 128), lambda i: (i, 0))
    const_spec = lambda a: pl.BlockSpec(a.shape, lambda i: (0, 0))

    out_pad = pl.pallas_call(
        kernel,
        grid=(Bp // BM,),
        in_specs=[batch_spec] + [const_spec(w) for w in packed],
        out_specs=batch_spec,
        out_shape=jax.ShapeDtypeStruct((Bp, 128), jnp.float32),
        compiler_params=pltpu.CompilerParams(
            dimension_semantics=("parallel",)),
    )(xt, *packed)

    return out_pad[:B, 0:1], out_pad[:B, 1:4]


# ---------------------------------------------------------------------------
# Deterministic parameter init (PyTorch nn.Linear default U(-k, k), k=1/sqrt(fan_in));
# weights stored as (in, out).
# ---------------------------------------------------------------------------
def make_linear(key, fan_in, fan_out):
    kw, kb = jax.random.split(key)
    k = 1.0 / math.sqrt(fan_in)
    w = jax.random.uniform(kw, (fan_in, fan_out), jnp.float32, -k, k)
    b = jax.random.uniform(kb, (1, fan_out), jnp.float32, -k, k)
    return w, b


def make_params(seed=0):
    key = jax.random.PRNGKey(seed)
    keys = jax.random.split(key, 10)
    we1, be1 = make_linear(keys[0], 50, 400)
    we2, be2 = make_linear(keys[1], 400, 300)
    we3, be3 = make_linear(keys[2], 300, 200)
    we4, be4 = make_linear(keys[3], 200, 3)
    wp, bp = make_linear(keys[4], 1, 3)
    wd1, bd1 = make_linear(keys[5], 6, 100)
    wd2, bd2 = make_linear(keys[6], 100, 200)
    wd3, bd3 = make_linear(keys[7], 200, 450)
    wd4, bd4 = make_linear(keys[8], 450, 50)
    wd5, bd5 = make_linear(keys[9], 50, 1)
    return (we1, be1, we2, be2, we3, be3, we4, be4,
            wp, bp, wd1, bd1, wd2, bd2, wd3, bd3, wd4, bd4, wd5, bd5)


# ---------------------------------------------------------------------------
# References (pure JAX)
# ---------------------------------------------------------------------------
def reference_mirror(x, t, params, act_dtype):
    """Mirrors the kernel arithmetic (bf16 weights/inputs at the MXU, f32
    accumulation, folded project/bias layers, tanh in act_dtype) but with the
    original un-padded module structure."""
    (we1, be1, we2, be2, we3, be3, we4, be4,
     wp, bp, wd1, bd1, wd2, bd2, wd3, bd3, wd4, bd4, wd5, bd5) = params
    bf16, f32 = jnp.bfloat16, jnp.float32
    hi = lax.Precision.HIGHEST

    def mm(a, w):
        return jnp.dot(a.astype(bf16), w.astype(bf16), preferred_element_type=f32)

    def act(pre):
        return jnp.tanh(pre.astype(act_dtype)).astype(f32)

    h = act(mm(x, we1) + be1.astype(bf16).astype(f32))
    h = act(mm(h, we2) + be2)
    h = act(mm(h, we3) + be3)
    encoded = act(mm(h, we4) + be4)

    wd1a, wd1b = wd1[:3, :], wd1[3:, :]
    wt = jnp.dot(wp, wd1b, precision=hi)
    bd1f = bd1 + jnp.dot(bp, wd1b, precision=hi)
    d = act(mm(encoded, wd1a) + mm(t, wt) + bd1f.astype(bf16).astype(f32))
    d = act(mm(d, wd2) + bd2)
    d = act(mm(d, wd3) + bd3)
    d = act(mm(d, wd4) + bd4)
    decoded = mm(d, wd5) + bd5
    return decoded, encoded


def reference_f32(x, t, params):
    """Exact f32 forward of the original module."""
    (we1, be1, we2, be2, we3, be3, we4, be4,
     wp, bp, wd1, bd1, wd2, bd2, wd3, bd3, wd4, bd4, wd5, bd5) = params
    hi = lax.Precision.HIGHEST
    dot = lambda a, b: jnp.dot(a, b, precision=hi)
    h = jnp.tanh(dot(x, we1) + be1)
    h = jnp.tanh(dot(h, we2) + be2)
    h = jnp.tanh(dot(h, we3) + be3)
    encoded = jnp.tanh(dot(h, we4) + be4)
    t_proj = dot(t, wp) + bp
    aux = jnp.concatenate([encoded, t_proj], axis=1)
    d = jnp.tanh(dot(aux, wd1) + bd1)
    d = jnp.tanh(dot(d, wd2) + bd2)
    d = jnp.tanh(dot(d, wd3) + bd3)
    d = jnp.tanh(dot(d, wd4) + bd4)
    decoded = dot(d, wd5) + bd5
    return decoded, encoded


if __name__ == "__main__":
    B = 8
    key = jax.random.PRNGKey(0)
    kx, kt = jax.random.split(key)
    x = jax.random.normal(kx, (B, 50), jnp.float32)
    t = jax.random.normal(kt, (B, 1), jnp.float32)

    params = make_params(seed=0)
    packed = pack_params(params)

    decoded, encoded = autoencoder_forward(x, t, packed)
    decoded = jax.block_until_ready(decoded)
    encoded = jax.block_until_ready(encoded)
    assert decoded.shape == (B, 1) and encoded.shape == (B, 3)

    # Tight check: reference performing the same folded bf16-MXU / f32-accumulate
    # math (tolerance widened slightly on the bf16-tanh generations).
    act_dtype = _tanh_dtype()
    ref_dec, ref_enc = reference_mirror(x, t, params, act_dtype)
    tight = 5e-3 if act_dtype is jnp.float32 else 5e-2
    assert jnp.allclose(decoded, ref_dec, atol=tight, rtol=tight)
    assert jnp.allclose(encoded, ref_enc, atol=tight, rtol=tight)

    # Loose check: exact f32 module semantics (difference = bf16 quantization only).
    f32_dec, f32_enc = reference_f32(x, t, params)
    assert jnp.allclose(decoded, f32_dec, atol=0.15, rtol=0.15)
    assert jnp.allclose(encoded, f32_enc, atol=0.15, rtol=0.15)

    print("KERNEL_OK")
</pallas_src>

<mosaic_0001>
module attributes {stable_mosaic.version = 11 : i64} {
  func.func @kernel(%arg0: i32, %arg1: memref<16x128xbf16, #tpu.memory_space<vmem>>, %arg2: memref<128x512xbf16, #tpu.memory_space<vmem>>, %arg3: memref<512x384xbf16, #tpu.memory_space<vmem>>, %arg4: memref<384x256xbf16, #tpu.memory_space<vmem>>, %arg5: memref<256x128xbf16, #tpu.memory_space<vmem>>, %arg6: memref<128x128xbf16, #tpu.memory_space<vmem>>, %arg7: memref<128x256xbf16, #tpu.memory_space<vmem>>, %arg8: memref<256x512xbf16, #tpu.memory_space<vmem>>, %arg9: memref<512x128xbf16, #tpu.memory_space<vmem>>, %arg10: memref<128x128xbf16, #tpu.memory_space<vmem>>, %arg11: memref<8x512xf32, #tpu.memory_space<vmem>>, %arg12: memref<16x128xf32, #tpu.memory_space<vmem>>) attributes {dimension_semantics = [#tpu.dimension_semantics<parallel>], iteration_bounds = array<i64: 1>, scalar_prefetch = 0 : i64, scratch_operands = 0 : i64, tpu.core_type = #tpu.core_type<tc>, window_params = [{transform_indices = @transform_0, window_bounds = array<i64: 16, 128>}, {pipeline_mode = #tpu.pipeline_mode<synchronous>, transform_indices = @transform_1, window_bounds = array<i64: 128, 512>}, {pipeline_mode = #tpu.pipeline_mode<synchronous>, transform_indices = @transform_2, window_bounds = array<i64: 512, 384>}, {pipeline_mode = #tpu.pipeline_mode<synchronous>, transform_indices = @transform_3, window_bounds = array<i64: 384, 256>}, {pipeline_mode = #tpu.pipeline_mode<synchronous>, transform_indices = @transform_4, window_bounds = array<i64: 256, 128>}, {pipeline_mode = #tpu.pipeline_mode<synchronous>, transform_indices = @transform_5, window_bounds = array<i64: 128, 128>}, {pipeline_mode = #tpu.pipeline_mode<synchronous>, transform_indices = @transform_6, window_bounds = array<i64: 128, 256>}, {pipeline_mode = #tpu.pipeline_mode<synchronous>, transform_indices = @transform_7, window_bounds = array<i64: 256, 512>}, {pipeline_mode = #tpu.pipeline_mode<synchronous>, transform_indices = @transform_8, window_bounds = array<i64: 512, 128>}, {pipeline_mode = #tpu.pipeline_mode<synchronous>, transform_indices = @transform_9, window_bounds = array<i64: 128, 128>}, {pipeline_mode = #tpu.pipeline_mode<synchronous>, transform_indices = @transform_10, window_bounds = array<i64: 8, 512>}, {transform_indices = @transform_11, window_bounds = array<i64: 16, 128>}]} {
    %c0 = arith.constant 0 : index
    %c0_0 = arith.constant 0 : index
    %0 = vector.load %arg11[%c0, %c0_0] : memref<8x512xf32, #tpu.memory_space<vmem>>, vector<8x512xf32>
    %1 = vector.extract_strided_slice %0 {offsets = [0, 0], sizes = [1, 384], strides = [1, 1]} : vector<8x512xf32> to vector<1x384xf32>
    %2 = vector.extract_strided_slice %0 {offsets = [1, 0], sizes = [1, 256], strides = [1, 1]} : vector<8x512xf32> to vector<1x256xf32>
    %3 = vector.extract_strided_slice %0 {offsets = [2, 0], sizes = [1, 128], strides = [1, 1]} : vector<8x512xf32> to vector<1x128xf32>
    %4 = vector.extract_strided_slice %0 {offsets = [3, 0], sizes = [1, 256], strides = [1, 1]} : vector<8x512xf32> to vector<1x256xf32>
    %5 = vector.extract_strided_slice %0 {offsets = [4, 0], sizes = [1, 512], strides = [1, 1]} : vector<8x512xf32> to vector<1x512xf32>
    %6 = vector.extract_strided_slice %0 {offsets = [5, 0], sizes = [1, 128], strides = [1, 1]} : vector<8x512xf32> to vector<1x128xf32>
    %7 = vector.extract_strided_slice %0 {offsets = [6, 0], sizes = [1, 128], strides = [1, 1]} : vector<8x512xf32> to vector<1x128xf32>
    %c0_1 = arith.constant 0 : index
    %c0_2 = arith.constant 0 : index
    %8 = vector.load %arg1[%c0_1, %c0_2] : memref<16x128xbf16, #tpu.memory_space<vmem>>, vector<16x128xbf16>
    %c0_3 = arith.constant 0 : index
    %c0_4 = arith.constant 0 : index
    %9 = vector.load %arg2[%c0_3, %c0_4] : memref<128x512xbf16, #tpu.memory_space<vmem>>, vector<128x512xbf16>
    %cst = arith.constant dense<0.000000e+00> : vector<16x512xf32>
    %10 = tpu.matmul %8, %9, %cst {dimension_numbers = #tpu.dot_dimension_numbers<[1], [0], [0], [1], [0, 0, 1, 1], [], []>} : vector<16x128xbf16>, vector<128x512xbf16>, vector<16x512xf32> -> vector<16x512xf32>
    %11 = arith.truncf %10 : vector<16x512xf32> to vector<16x512xbf16>
    %12 = math.tanh %11 : vector<16x512xbf16>
    %c0_5 = arith.constant 0 : index
    %c0_6 = arith.constant 0 : index
    %13 = vector.load %arg3[%c0_5, %c0_6] : memref<512x384xbf16, #tpu.memory_space<vmem>>, vector<512x384xbf16>
    %cst_7 = arith.constant dense<0.000000e+00> : vector<16x384xf32>
    %14 = tpu.matmul %12, %13, %cst_7 {dimension_numbers = #tpu.dot_dimension_numbers<[1], [0], [0], [1], [0, 0, 1, 1], [], []>} : vector<16x512xbf16>, vector<512x384xbf16>, vector<16x384xf32> -> vector<16x384xf32>
    %15 = vector.broadcast %1 : vector<1x384xf32> to vector<16x384xf32>
    %16 = arith.addf %14, %15 : vector<16x384xf32>
    %17 = arith.truncf %16 : vector<16x384xf32> to vector<16x384xbf16>
    %18 = math.tanh %17 : vector<16x384xbf16>
    %c0_8 = arith.constant 0 : index
    %c0_9 = arith.constant 0 : index
    %19 = vector.load %arg4[%c0_8, %c0_9] : memref<384x256xbf16, #tpu.memory_space<vmem>>, vector<384x256xbf16>
    %cst_10 = arith.constant dense<0.000000e+00> : vector<16x256xf32>
    %20 = tpu.matmul %18, %19, %cst_10 {dimension_numbers = #tpu.dot_dimension_numbers<[1], [0], [0], [1], [0, 0, 1, 1], [], []>} : vector<16x384xbf16>, vector<384x256xbf16>, vector<16x256xf32> -> vector<16x256xf32>
    %21 = vector.broadcast %2 : vector<1x256xf32> to vector<16x256xf32>
    %22 = arith.addf %20, %21 : vector<16x256xf32>
    %23 = arith.truncf %22 : vector<16x256xf32> to vector<16x256xbf16>
    %24 = math.tanh %23 : vector<16x256xbf16>
    %c0_11 = arith.constant 0 : index
    %c0_12 = arith.constant 0 : index
    %25 = vector.load %arg5[%c0_11, %c0_12] : memref<256x128xbf16, #tpu.memory_space<vmem>>, vector<256x128xbf16>
    %cst_13 = arith.constant dense<0.000000e+00> : vector<16x128xf32>
    %26 = tpu.matmul %24, %25, %cst_13 {dimension_numbers = #tpu.dot_dimension_numbers<[1], [0], [0], [1], [0, 0, 1, 1], [], []>} : vector<16x256xbf16>, vector<256x128xbf16>, vector<16x128xf32> -> vector<16x128xf32>
    %27 = vector.broadcast %3 : vector<1x128xf32> to vector<16x128xf32>
    %28 = arith.addf %26, %27 : vector<16x128xf32>
    %29 = arith.truncf %28 : vector<16x128xf32> to vector<16x128xbf16>
    %30 = math.tanh %29 : vector<16x128xbf16>
    %31 = tpu.iota {dimensions = array<i32: 1>} : vector<16x128xi32>
    %c50_i32 = arith.constant 50 : i32
    %32 = vector.broadcast %c50_i32 : i32 to vector<16x128xi32>
    %33 = arith.cmpi eq, %31, %32 : vector<16x128xi32>
    %c51_i32 = arith.constant 51 : i32
    %34 = vector.broadcast %c51_i32 : i32 to vector<16x128xi32>
    %35 = arith.cmpi eq, %31, %34 : vector<16x128xi32>
    %36 = arith.ori %33, %35 : vector<16x128xi1>
    %cst_14 = arith.constant 0.000000e+00 : bf16
    %37 = vector.broadcast %cst_14 : bf16 to vector<16x128xbf16>
    %38 = arith.select %36, %8, %37 : vector<16x128xi1>, vector<16x128xbf16>
    %39 = arith.addf %30, %38 : vector<16x128xbf16>
    %c0_15 = arith.constant 0 : index
    %c0_16 = arith.constant 0 : index
    %40 = vector.load %arg6[%c0_15, %c0_16] : memref<128x128xbf16, #tpu.memory_space<vmem>>, vector<128x128xbf16>
    %cst_17 = arith.constant dense<0.000000e+00> : vector<16x128xf32>
    %41 = tpu.matmul %39, %40, %cst_17 {dimension_numbers = #tpu.dot_dimension_numbers<[1], [0], [0], [1], [0, 0, 1, 1], [], []>} : vector<16x128xbf16>, vector<128x128xbf16>, vector<16x128xf32> -> vector<16x128xf32>
    %42 = arith.truncf %41 : vector<16x128xf32> to vector<16x128xbf16>
    %43 = math.tanh %42 : vector<16x128xbf16>
    %c0_18 = arith.constant 0 : index
    %c0_19 = arith.constant 0 : index
    %44 = vector.load %arg7[%c0_18, %c0_19] : memref<128x256xbf16, #tpu.memory_space<vmem>>, vector<128x256xbf16>
    %cst_20 = arith.constant dense<0.000000e+00> : vector<16x256xf32>
    %45 = tpu.matmul %43, %44, %cst_20 {dimension_numbers = #tpu.dot_dimension_numbers<[1], [0], [0], [1], [0, 0, 1, 1], [], []>} : vector<16x128xbf16>, vector<128x256xbf16>, vector<16x256xf32> -> vector<16x256xf32>
    %46 = vector.broadcast %4 : vector<1x256xf32> to vector<16x256xf32>
    %47 = arith.addf %45, %46 : vector<16x256xf32>
    %48 = arith.truncf %47 : vector<16x256xf32> to vector<16x256xbf16>
    %49 = math.tanh %48 : vector<16x256xbf16>
    %c0_21 = arith.constant 0 : index
    %c0_22 = arith.constant 0 : index
    %50 = vector.load %arg8[%c0_21, %c0_22] : memref<256x512xbf16, #tpu.memory_space<vmem>>, vector<256x512xbf16>
    %cst_23 = arith.constant dense<0.000000e+00> : vector<16x512xf32>
    %51 = tpu.matmul %49, %50, %cst_23 {dimension_numbers = #tpu.dot_dimension_numbers<[1], [0], [0], [1], [0, 0, 1, 1], [], []>} : vector<16x256xbf16>, vector<256x512xbf16>, vector<16x512xf32> -> vector<16x512xf32>
    %52 = vector.broadcast %5 : vector<1x512xf32> to vector<16x512xf32>
    %53 = arith.addf %51, %52 : vector<16x512xf32>
    %54 = arith.truncf %53 : vector<16x512xf32> to vector<16x512xbf16>
    %55 = math.tanh %54 : vector<16x512xbf16>
    %c0_24 = arith.constant 0 : index
    %c0_25 = arith.constant 0 : index
    %56 = vector.load %arg9[%c0_24, %c0_25] : memref<512x128xbf16, #tpu.memory_space<vmem>>, vector<512x128xbf16>
    %cst_26 = arith.constant dense<0.000000e+00> : vector<16x128xf32>
    %57 = tpu.matmul %55, %56, %cst_26 {dimension_numbers = #tpu.dot_dimension_numbers<[1], [0], [0], [1], [0, 0, 1, 1], [], []>} : vector<16x512xbf16>, vector<512x128xbf16>, vector<16x128xf32> -> vector<16x128xf32>
    %58 = vector.broadcast %6 : vector<1x128xf32> to vector<16x128xf32>
    %59 = arith.addf %57, %58 : vector<16x128xf32>
    %60 = arith.truncf %59 : vector<16x128xf32> to vector<16x128xbf16>
    %61 = math.tanh %60 : vector<16x128xbf16>
    %c0_27 = arith.constant 0 : index
    %c0_28 = arith.constant 0 : index
    %62 = vector.load %arg10[%c0_27, %c0_28] : memref<128x128xbf16, #tpu.memory_space<vmem>>, vector<128x128xbf16>
    %cst_29 = arith.constant dense<0.000000e+00> : vector<16x128xf32>
    %63 = tpu.matmul %61, %62, %cst_29 {dimension_numbers = #tpu.dot_dimension_numbers<[1], [0], [0], [1], [0, 0, 1, 1], [], []>} : vector<16x128xbf16>, vector<128x128xbf16>, vector<16x128xf32> -> vector<16x128xf32>
    %64 = vector.broadcast %7 : vector<1x128xf32> to vector<16x128xf32>
    %65 = arith.addf %63, %64 : vector<16x128xf32>
    %66 = arith.extf %30 : vector<16x128xbf16> to vector<16x128xf32>
    %67 = arith.addf %65, %66 : vector<16x128xf32>
    %c0_30 = arith.constant 0 : index
    %c0_31 = arith.constant 0 : index
    %68 = vector.load %arg12[%c0_30, %c0_31] : memref<16x128xf32, #tpu.memory_space<vmem>>, vector<16x128xf32>
    tpu.vector_store %arg12[%c0_30, %c0_31], %67 {strides = array<i32>} : memref<16x128xf32, #tpu.memory_space<vmem>>, vector<16x128xf32>,
    return
  }
  func.func @transform_0(%arg0: i32) -> (i32, i32) {
    %c0_i32 = arith.constant 0 : i32
    %c0_i32_0 = arith.constant 0 : i32
    return %arg0, %c0_i32 : i32, i32
  }
  func.func @transform_1(%arg0: i32) -> (i32, i32) {
    %c0_i32 = arith.constant 0 : i32
    %c0_i32_0 = arith.constant 0 : i32
    %c0_i32_1 = arith.constant 0 : i32
    return %c0_i32, %c0_i32_0 : i32, i32
  }
  func.func @transform_2(%arg0: i32) -> (i32, i32) {
    %c0_i32 = arith.constant 0 : i32
    %c0_i32_0 = arith.constant 0 : i32
    %c0_i32_1 = arith.constant 0 : i32
    return %c0_i32, %c0_i32_0 : i32, i32
  }
  func.func @transform_3(%arg0: i32) -> (i32, i32) {
    %c0_i32 = arith.constant 0 : i32
    %c0_i32_0 = arith.constant 0 : i32
    %c0_i32_1 = arith.constant 0 : i32
    return %c0_i32, %c0_i32_0 : i32, i32
  }
  func.func @transform_4(%arg0: i32) -> (i32, i32) {
    %c0_i32 = arith.constant 0 : i32
    %c0_i32_0 = arith.constant 0 : i32
    %c0_i32_1 = arith.constant 0 : i32
    return %c0_i32, %c0_i32_0 : i32, i32
  }
  func.func @transform_5(%arg0: i32) -> (i32, i32) {
    %c0_i32 = arith.constant 0 : i32
    %c0_i32_0 = arith.constant 0 : i32
    %c0_i32_1 = arith.constant 0 : i32
    return %c0_i32, %c0_i32_0 : i32, i32
  }
  func.func @transform_6(%arg0: i32) -> (i32, i32) {
    %c0_i32 = arith.constant 0 : i32
    %c0_i32_0 = arith.constant 0 : i32
    %c0_i32_1 = arith.constant 0 : i32
    return %c0_i32, %c0_i32_0 : i32, i32
  }
  func.func @transform_7(%arg0: i32) -> (i32, i32) {
    %c0_i32 = arith.constant 0 : i32
    %c0_i32_0 = arith.constant 0 : i32
    %c0_i32_1 = arith.constant 0 : i32
    return %c0_i32, %c0_i32_0 : i32, i32
  }
  func.func @transform_8(%arg0: i32) -> (i32, i32) {
    %c0_i32 = arith.constant 0 : i32
    %c0_i32_0 = arith.constant 0 : i32
    %c0_i32_1 = arith.constant 0 : i32
    return %c0_i32, %c0_i32_0 : i32, i32
  }
  func.func @transform_9(%arg0: i32) -> (i32, i32) {
    %c0_i32 = arith.constant 0 : i32
    %c0_i32_0 = arith.constant 0 : i32
    %c0_i32_1 = arith.constant 0 : i32
    return %c0_i32, %c0_i32_0 : i32, i32
  }
  func.func @transform_10(%arg0: i32) -> (i32, i32) {
    %c0_i32 = arith.constant 0 : i32
    %c0_i32_0 = arith.constant 0 : i32
    %c0_i32_1 = arith.constant 0 : i32
    return %c0_i32, %c0_i32_0 : i32, i32
  }
  func.func @transform_11(%arg0: i32) -> (i32, i32) {
    %c0_i32 = arith.constant 0 : i32
    %c0_i32_0 = arith.constant 0 : i32
    return %arg0, %c0_i32 : i32, i32
  }
}

</mosaic_0001>

<llo_original>
// kernel: tpu_custom_call.1
$region0: #{tpu_custom_call.1}
  #allocation0 [shape = 'u32[]', space=smem, size = 0x4, offset = 0x4, fixed_abs, tag = 'smem constant byte address 0x4 - core index']
  #allocation1 [shape = 'u32[144,128]{1,0:T(1,128)}', space=vmem, size = 0x12000, scoped, tag = 'internal scratch']
  %s0 = inlined_call_operand.hbm [shape: bf16[16,128], index: 0, kind: input, shape index: {}]
  %s1 = inlined_call_operand.hbm [shape: bf16[128,512], index: 1, kind: input, shape index: {}]
  %s2 = inlined_call_operand.hbm [shape: bf16[512,384], index: 2, kind: input, shape index: {}]
  %s3 = inlined_call_operand.hbm [shape: bf16[384,256], index: 3, kind: input, shape index: {}]
  %s4 = inlined_call_operand.hbm [shape: bf16[256,128], index: 4, kind: input, shape index: {}]
  %s5 = inlined_call_operand.hbm [shape: bf16[128,128], index: 5, kind: input, shape index: {}]
  %s6 = inlined_call_operand.hbm [shape: bf16[128,256], index: 6, kind: input, shape index: {}]
  %s7 = inlined_call_operand.hbm [shape: bf16[256,512], index: 7, kind: input, shape index: {}]
  %s8 = inlined_call_operand.hbm [shape: bf16[512,128], index: 8, kind: input, shape index: {}]
  %s9 = inlined_call_operand.hbm [shape: bf16[128,128], index: 9, kind: input, shape index: {}]
  %s10 = inlined_call_operand.vmem [shape: f32[8,512], index: 10, kind: input, shape index: {}]
  %s11 = inlined_call_operand.hbm [shape: f32[16,128], index: 11, kind: output, shape index: {}]
  %s12 = sld [smem:[#allocation0]]
  $region94: #{tpu_custom_call.1} parent=0
    _
  %s14 = ssub.s32 1, %s12
  %s15 = scalar_select 0, %s14, %s12
  $region1: #{tpu_custom_call.1} parent=0
    #allocation2 [shape = 'u8[4096]{0}', space=vmem, size = 0x1000, scoped, tag = 'input window, operand 0, single buffered']
    #allocation3 [shape = 's32[1]{0}', space=sflag, size = 0x4, scoped, tag = 'scoped memory for tpu_custom_call.1']
    #allocation4 [shape = 's32[1]{0}', space=sflag, size = 0x4, scoped, tag = 'scoped memory for tpu_custom_call.1']
    #allocation5 [shape = 'u8[131072]{0}', space=vmem, size = 0x20000, scoped, tag = 'input window, operand 1, single buffered']
    #allocation6 [shape = 's32[1]{0}', space=sflag, size = 0x4, scoped, tag = 'scoped memory for tpu_custom_call.1']
    #allocation7 [shape = 'u8[393216]{0}', space=vmem, size = 0x60000, scoped, tag = 'input window, operand 2, single buffered']
    #allocation8 [shape = 'u8[196608]{0}', space=vmem, size = 0x30000, scoped, tag = 'input window, operand 3, single buffered']
    #allocation9 [shape = 's32[1]{0}', space=sflag, size = 0x4, scoped, tag = 'scoped memory for tpu_custom_call.1']
    #allocation10 [shape = 'u8[65536]{0}', space=vmem, size = 0x10000, scoped, tag = 'input window, operand 4, single buffered']
    #allocation11 [shape = 'u8[32768]{0}', space=vmem, size = 0x8000, scoped, tag = 'input window, operand 5, single buffered']
    #allocation12 [shape = 's32[1]{0}', space=sflag, size = 0x4, scoped, tag = 'scoped memory for tpu_custom_call.1']
    #allocation13 [shape = 'u8[65536]{0}', space=vmem, size = 0x10000, scoped, tag = 'input window, operand 6, single buffered']
    #allocation14 [shape = 'u8[262144]{0}', space=vmem, size = 0x40000, scoped, tag = 'input window, operand 7, single buffered']
    #allocation15 [shape = 's32[1]{0}', space=sflag, size = 0x4, scoped, tag = 'scoped memory for tpu_custom_call.1']
    #allocation16 [shape = 'u8[131072]{0}', space=vmem, size = 0x20000, scoped, tag = 'input window, operand 8, single buffered']
    #allocation17 [shape = 'u8[32768]{0}', space=vmem, size = 0x8000, scoped, tag = 'input window, operand 9, single buffered']
    #allocation18 [shape = 's32[1]{0}', space=sflag, size = 0x4, scoped, tag = 'scoped memory for tpu_custom_call.1']
    #allocation19 [shape = 'u8[8192]{0}', space=vmem, size = 0x2000, scoped, tag = 'output window, operand 0, single buffered']
    %16 = vsyncpa [#allocation3], 0
    %17 = vsyncpa [#allocation6], 0
    %18 = vsyncpa [#allocation9], 0
    %19 = vsyncpa [#allocation12], 0
    %20 = vsyncpa [#allocation15], 0
    %21 = vsyncpa [#allocation18], 0
    %22 = vsyncpa [#allocation4], 0
    // Predicated region
    $region2: #{tpu_custom_call.1} parent=1 // pred_check
      _
    $region3: #{tpu_custom_call.1} parent=1 // pred_check_branch
      %24 = sbr.rel (0) target = $region5
    $region4: #{tpu_custom_call.1} parent=1 // pred_region
      %s26 = ssub.s32 128, 128
      %27 = vsyncadd [#allocation3], %s26
      %s28 = sshll.u32 [#allocation2], 4
      %s29 = int_to_ptr.vmem [resolvable:$true] %s28
      %34 = dma.hbm_to_vmem [thread:$0]  %s0, 128, %s29, [#allocation3], 64, 64, 4
    $region5: #{tpu_custom_call.1} parent=1 // pred_fallthru
      _
    // Predicated region
    $region6: #{tpu_custom_call.1} parent=1 // pred_check
      _
    $region7: #{tpu_custom_call.1} parent=1 // pred_check_branch
      %36 = sbr.rel (0) target = $region9
    $region8: #{tpu_custom_call.1} parent=1 // pred_region
      %s38 = ssub.s32 4096, 4096
      %39 = vsyncadd [#allocation6], %s38
      %s40 = sshll.u32 [#allocation5], 4
      %s41 = int_to_ptr.vmem [resolvable:$true] %s40
      %46 = dma.hbm_to_vmem [thread:$0]  %s1, 4096, %s41, [#allocation6], 256, 256, 16
    $region9: #{tpu_custom_call.1} parent=1 // pred_fallthru
      _
    // Predicated region
    $region10: #{tpu_custom_call.1} parent=1 // pred_check
      _
    $region11: #{tpu_custom_call.1} parent=1 // pred_check_branch
      %48 = sbr.rel (0) target = $region13
    $region12: #{tpu_custom_call.1} parent=1 // pred_region
      %s50 = ssub.s32 12288, 12288
      %51 = vsyncadd [#allocation6], %s50
      %s52 = sshll.u32 [#allocation7], 4
      %s53 = int_to_ptr.vmem [resolvable:$true] %s52
      %58 = dma.hbm_to_vmem [thread:$0]  %s2, 12288, %s53, [#allocation6], 192, 192, 12
    $region13: #{tpu_custom_call.1} parent=1 // pred_fallthru
      _
    // Predicated region
    $region14: #{tpu_custom_call.1} parent=1 // pred_check
      _
    $region15: #{tpu_custom_call.1} parent=1 // pred_check_branch
      %60 = sbr.rel (0) target = $region17
    $region16: #{tpu_custom_call.1} parent=1 // pred_region
      %s62 = ssub.s32 6144, 6144
      %63 = vsyncadd [#allocation9], %s62
      %s64 = sshll.u32 [#allocation8], 4
      %s65 = int_to_ptr.vmem [resolvable:$true] %s64
      %70 = dma.hbm_to_vmem [thread:$0]  %s3, 6144, %s65, [#allocation9], 128, 128, 8
    $region17: #{tpu_custom_call.1} parent=1 // pred_fallthru
      _
    // Predicated region
    $region18: #{tpu_custom_call.1} parent=1 // pred_check
      _
    $region19: #{tpu_custom_call.1} parent=1 // pred_check_branch
      %72 = sbr.rel (0) target = $region21
    $region20: #{tpu_custom_call.1} parent=1 // pred_region
      %s74 = ssub.s32 2048, 2048
      %75 = vsyncadd [#allocation9], %s74
      %s76 = sshll.u32 [#allocation10], 4
      %s77 = int_to_ptr.vmem [resolvable:$true] %s76
      %82 = dma.hbm_to_vmem [thread:$0]  %s4, 2048, %s77, [#allocation9], 64, 64, 4
    $region21: #{tpu_custom_call.1} parent=1 // pred_fallthru
      _
    // Predicated region
    $region22: #{tpu_custom_call.1} parent=1 // pred_check
      _
    $region23: #{tpu_custom_call.1} parent=1 // pred_check_branch
      %84 = sbr.rel (0) target = $region25
    $region24: #{tpu_custom_call.1} parent=1 // pred_region
      %s86 = ssub.s32 1024, 1024
      %87 = vsyncadd [#allocation12], %s86
      %s88 = sshll.u32 [#allocation11], 4
      %s89 = int_to_ptr.vmem [resolvable:$true] %s88
      %94 = dma.hbm_to_vmem [thread:$0]  %s5, 1024, %s89, [#allocation12], 64, 64, 4
    $region25: #{tpu_custom_call.1} parent=1 // pred_fallthru
      _
    // Predicated region
    $region26: #{tpu_custom_call.1} parent=1 // pred_check
      _
    $region27: #{tpu_custom_call.1} parent=1 // pred_check_branch
      %96 = sbr.rel (0) target = $region29
    $region28: #{tpu_custom_call.1} parent=1 // pred_region
      %s98 = ssub.s32 2048, 2048
      %99 = vsyncadd [#allocation12], %s98
      %s100 = sshll.u32 [#allocation13], 4
      %s101 = int_to_ptr.vmem [resolvable:$true] %s100
      %106 = dma.hbm_to_vmem [thread:$0]  %s6, 2048, %s101, [#allocation12], 128, 128, 8
    $region29: #{tpu_custom_call.1} parent=1 // pred_fallthru
      _
    // Predicated region
    $region30: #{tpu_custom_call.1} parent=1 // pred_check
      _
    $region31: #{tpu_custom_call.1} parent=1 // pred_check_branch
      %108 = sbr.rel (0) target = $region33
    $region32: #{tpu_custom_call.1} parent=1 // pred_region
      %s110 = ssub.s32 8192, 8192
      %111 = vsyncadd [#allocation15], %s110
      %s112 = sshll.u32 [#allocation14], 4
      %s113 = int_to_ptr.vmem [resolvable:$true] %s112
      %118 = dma.hbm_to_vmem [thread:$0]  %s7, 8192, %s113, [#allocation15], 256, 256, 16
    $region33: #{tpu_custom_call.1} parent=1 // pred_fallthru
      _
    // Predicated region
    $region34: #{tpu_custom_call.1} parent=1 // pred_check
      _
    $region35: #{tpu_custom_call.1} parent=1 // pred_check_branch
      %120 = sbr.rel (0) target = $region37
    $region36: #{tpu_custom_call.1} parent=1 // pred_region
      %s122 = ssub.s32 4096, 4096
      %123 = vsyncadd [#allocation15], %s122
      %s124 = sshll.u32 [#allocation16], 4
      %s125 = int_to_ptr.vmem [resolvable:$true] %s124
      %130 = dma.hbm_to_vmem [thread:$0]  %s8, 4096, %s125, [#allocation15], 64, 64, 4
    $region37: #{tpu_custom_call.1} parent=1 // pred_fallthru
      _
    // Predicated region
    $region38: #{tpu_custom_call.1} parent=1 // pred_check
      _
    $region39: #{tpu_custom_call.1} parent=1 // pred_check_branch
      %132 = sbr.rel (0) target = $region41
    $region40: #{tpu_custom_call.1} parent=1 // pred_region
      %s134 = ssub.s32 1024, 1024
      %135 = vsyncadd [#allocation18], %s134
      %s136 = sshll.u32 [#allocation17], 4
      %s137 = int_to_ptr.vmem [resolvable:$true] %s136
      %142 = dma.hbm_to_vmem [thread:$0]  %s9, 1024, %s137, [#allocation18], 64, 64, 4
    $region41: #{tpu_custom_call.1} parent=1 // pred_fallthru
      _
    // Predicated region
    $region42: #{tpu_custom_call.1} parent=1 // pred_check
      _
    $region43: #{tpu_custom_call.1} parent=1 // pred_check_branch
      %144 = sbr.rel (0) target = $region45
    $region44: #{tpu_custom_call.1} parent=1 // pred_region
      _
    $region45: #{tpu_custom_call.1} parent=1 // pred_fallthru
      _
    // Predicated region
    $region46: #{tpu_custom_call.1} parent=1 // pred_check
      _
    $region47: #{tpu_custom_call.1} parent=1 // pred_check_branch
      %146 = sbr.rel (0) target = $region49
    $region48: #{tpu_custom_call.1} parent=1 // pred_region
      %147 = dma.done [#allocation3], 128
    $region49: #{tpu_custom_call.1} parent=1 // pred_fallthru
      _
    // Predicated region
    $region50: #{tpu_custom_call.1} parent=1 // pred_check
      _
    $region51: #{tpu_custom_call.1} parent=1 // pred_check_branch
      %149 = sbr.rel (0) target = $region53
    $region52: #{tpu_custom_call.1} parent=1 // pred_region
      %150 = dma.done [#allocation6], 4096
    $region53: #{tpu_custom_call.1} parent=1 // pred_fallthru
      _
    // Predicated region
    $region54: #{tpu_custom_call.1} parent=1 // pred_check
      _
    $region55: #{tpu_custom_call.1} parent=1 // pred_check_branch
      %152 = sbr.rel (0) target = $region57
    $region56: #{tpu_custom_call.1} parent=1 // pred_region
      %153 = dma.done [#allocation6], 12288
    $region57: #{tpu_custom_call.1} parent=1 // pred_fallthru
      _
    // Predicated region
    $region58: #{tpu_custom_call.1} parent=1 // pred_check
      _
    $region59: #{tpu_custom_call.1} parent=1 // pred_check_branch
      %155 = sbr.rel (0) target = $region61
    $region60: #{tpu_custom_call.1} parent=1 // pred_region
      %156 = dma.done [#allocation9], 6144
    $region61: #{tpu_custom_call.1} parent=1 // pred_fallthru
      _
    // Predicated region
    $region62: #{tpu_custom_call.1} parent=1 // pred_check
      _
    $region63: #{tpu_custom_call.1} parent=1 // pred_check_branch
      %158 = sbr.rel (0) target = $region65
    $region64: #{tpu_custom_call.1} parent=1 // pred_region
      %159 = dma.done [#allocation9], 2048
    $region65: #{tpu_custom_call.1} parent=1 // pred_fallthru
      _
    // Predicated region
    $region66: #{tpu_custom_call.1} parent=1 // pred_check
      _
    $region67: #{tpu_custom_call.1} parent=1 // pred_check_branch
      %161 = sbr.rel (0) target = $region69
    $region68: #{tpu_custom_call.1} parent=1 // pred_region
      %162 = dma.done [#allocation12], 1024
    $region69: #{tpu_custom_call.1} parent=1 // pred_fallthru
      _
    // Predicated region
    $region70: #{tpu_custom_call.1} parent=1 // pred_check
      _
    $region71: #{tpu_custom_call.1} parent=1 // pred_check_branch
      %164 = sbr.rel (0) target = $region73
    $region72: #{tpu_custom_call.1} parent=1 // pred_region
      %165 = dma.done [#allocation12], 2048
    $region73: #{tpu_custom_call.1} parent=1 // pred_fallthru
      _
    // Predicated region
    $region74: #{tpu_custom_call.1} parent=1 // pred_check
      _
    $region75: #{tpu_custom_call.1} parent=1 // pred_check_branch
      %167 = sbr.rel (0) target = $region77
    $region76: #{tpu_custom_call.1} parent=1 // pred_region
      %168 = dma.done [#allocation15], 8192
    $region77: #{tpu_custom_call.1} parent=1 // pred_fallthru
      _
    // Predicated region
    $region78: #{tpu_custom_call.1} parent=1 // pred_check
      _
    $region79: #{tpu_custom_call.1} parent=1 // pred_check_branch
      %170 = sbr.rel (0) target = $region81
    $region80: #{tpu_custom_call.1} parent=1 // pred_region
      %171 = dma.done [#allocation15], 4096
    $region81: #{tpu_custom_call.1} parent=1 // pred_fallthru
      _
    // Predicated region
    $region82: #{tpu_custom_call.1} parent=1 // pred_check
      _
    $region83: #{tpu_custom_call.1} parent=1 // pred_check_branch
      %173 = sbr.rel (0) target = $region85
    $region84: #{tpu_custom_call.1} parent=1 // pred_region
      %174 = dma.done [#allocation18], 1024
    $region85: #{tpu_custom_call.1} parent=1 // pred_fallthru
      _
    %v176 = vld [vmem:[%s10] sm:$0xff]
    %v177 = vld [vmem:[%s10 + $0x8] sm:$0xff]
    %v178 = vld [vmem:[%s10 + $0x10] sm:$0xff]
    %v179 = vld [vmem:[%s10 + $0x18] sm:$0xff]
    %v180 = vld [vmem:[#allocation2] sm:$0xf]
    %v181 = vld [vmem:[#allocation2 + $0x4] sm:$0xf]
    %v182 = vld [vmem:[#allocation5] sm:$0xff]
    %v183 = vld [vmem:[#allocation5 + $0x8] sm:$0xff]
    %v184 = vld [vmem:[#allocation5 + $0x10] sm:$0xff]
    %v185 = vld [vmem:[#allocation5 + $0x18] sm:$0xff]
    %v186 = vld [vmem:[#allocation5 + $0x20] sm:$0xff]
    %v187 = vld [vmem:[#allocation5 + $0x28] sm:$0xff]
    %v188 = vld [vmem:[#allocation5 + $0x30] sm:$0xff]
    %v189 = vld [vmem:[#allocation5 + $0x38] sm:$0xff]
    %v190 = vld [vmem:[#allocation5 + $0x40] sm:$0xff]
    %v191 = vld [vmem:[#allocation5 + $0x48] sm:$0xff]
    %v192 = vld [vmem:[#allocation5 + $0x50] sm:$0xff]
    %v193 = vld [vmem:[#allocation5 + $0x58] sm:$0xff]
    %v194 = vld [vmem:[#allocation5 + $0x60] sm:$0xff]
    %v195 = vld [vmem:[#allocation5 + $0x68] sm:$0xff]
    %v196 = vld [vmem:[#allocation5 + $0x70] sm:$0xff]
    %v197 = vld [vmem:[#allocation5 + $0x78] sm:$0xff]
    %v198 = vld [vmem:[#allocation5 + $0x80] sm:$0xff]
    %v199 = vld [vmem:[#allocation5 + $0x88] sm:$0xff]
    %v200 = vld [vmem:[#allocation5 + $0x90] sm:$0xff]
    %v201 = vld [vmem:[#allocation5 + $0x98] sm:$0xff]
    %v202 = vld [vmem:[#allocation5 + $0xa0] sm:$0xff]
    %v203 = vld [vmem:[#allocation5 + $0xa8] sm:$0xff]
    %v204 = vld [vmem:[#allocation5 + $0xb0] sm:$0xff]
    %v205 = vld [vmem:[#allocation5 + $0xb8] sm:$0xff]
    %v206 = vld [vmem:[#allocation5 + $0xc0] sm:$0xff]
    %v207 = vld [vmem:[#allocation5 + $0xc8] sm:$0xff]
    %v208 = vld [vmem:[#allocation5 + $0xd0] sm:$0xff]
    %v209 = vld [vmem:[#allocation5 + $0xd8] sm:$0xff]
    %v210 = vld [vmem:[#allocation5 + $0xe0] sm:$0xff]
    %v211 = vld [vmem:[#allocation5 + $0xe8] sm:$0xff]
    %v212 = vld [vmem:[#allocation5 + $0xf0] sm:$0xff]
    %v213 = vld [vmem:[#allocation5 + $0xf8] sm:$0xff]
    %v216 = vunpack.c.l.b16 %v180
    %v217 = vunpack.c.l.b16 %v181
    %v218 = vpack.c.b16 %v217, %v216
    %v252 = vunpack.c.l.b16 %v182
    %v253 = vunpack.c.h.b16 %v182
    %v254 = vunpack.c.l.b16 %v183
    %v255 = vunpack.c.h.b16 %v183
    %v256 = vunpack.c.l.b16 %v184
    %v257 = vunpack.c.h.b16 %v184
    %v258 = vunpack.c.l.b16 %v185
    %v259 = vunpack.c.h.b16 %v185
    %v260 = vunpack.c.l.b16 %v186
    %v261 = vunpack.c.h.b16 %v186
    %v262 = vunpack.c.l.b16 %v187
    %v263 = vunpack.c.h.b16 %v187
    %v264 = vunpack.c.l.b16 %v188
    %v265 = vunpack.c.h.b16 %v188
    %v266 = vunpack.c.l.b16 %v189
    %v267 = vunpack.c.h.b16 %v189
    %v268 = vunpack.c.l.b16 %v190
    %v269 = vunpack.c.h.b16 %v190
    %v270 = vunpack.c.l.b16 %v191
    %v271 = vunpack.c.h.b16 %v191
    %v272 = vunpack.c.l.b16 %v192
    %v273 = vunpack.c.h.b16 %v192
    %v274 = vunpack.c.l.b16 %v193
    %v275 = vunpack.c.h.b16 %v193
    %v276 = vunpack.c.l.b16 %v194
    %v277 = vunpack.c.h.b16 %v194
    %v278 = vunpack.c.l.b16 %v195
    %v279 = vunpack.c.h.b16 %v195
    %v280 = vunpack.c.l.b16 %v196
    %v281 = vunpack.c.h.b16 %v196
    %v282 = vunpack.c.l.b16 %v197
    %v283 = vunpack.c.h.b16 %v197
    %v284 = vunpack.c.l.b16 %v198
    %v285 = vunpack.c.h.b16 %v198
    %v286 = vunpack.c.l.b16 %v199
    %v287 = vunpack.c.h.b16 %v199
    %v288 = vunpack.c.l.b16 %v200
    %v289 = vunpack.c.h.b16 %v200
    %v290 = vunpack.c.l.b16 %v201
    %v291 = vunpack.c.h.b16 %v201
    %v292 = vunpack.c.l.b16 %v202
    %v293 = vunpack.c.h.b16 %v202
    %v294 = vunpack.c.l.b16 %v203
    %v295 = vunpack.c.h.b16 %v203
    %v296 = vunpack.c.l.b16 %v204
    %v297 = vunpack.c.h.b16 %v204
    %v298 = vunpack.c.l.b16 %v205
    %v299 = vunpack.c.h.b16 %v205
    %v300 = vunpack.c.l.b16 %v206
    %v301 = vunpack.c.h.b16 %v206
    %v302 = vunpack.c.l.b16 %v207
    %v303 = vunpack.c.h.b16 %v207
    %v304 = vunpack.c.l.b16 %v208
    %v305 = vunpack.c.h.b16 %v208
    %v306 = vunpack.c.l.b16 %v209
    %v307 = vunpack.c.h.b16 %v209
    %v308 = vunpack.c.l.b16 %v210
    %v309 = vunpack.c.h.b16 %v210
    %v310 = vunpack.c.l.b16 %v211
    %v311 = vunpack.c.h.b16 %v211
    %v312 = vunpack.c.l.b16 %v212
    %v313 = vunpack.c.h.b16 %v212
    %v314 = vunpack.c.l.b16 %v213
    %v315 = vunpack.c.h.b16 %v213
    %v316 = vpack.c.b16 %v256, %v252
    %v317 = vpack.c.b16 %v257, %v253
    %v318 = vpack.c.b16 %v258, %v254
    %v319 = vpack.c.b16 %v259, %v255
    %v320 = vpack.c.b16 %v264, %v260
    %v321 = vpack.c.b16 %v265, %v261
    %v322 = vpack.c.b16 %v266, %v262
    %v323 = vpack.c.b16 %v267, %v263
    %v324 = vpack.c.b16 %v272, %v268
    %v325 = vpack.c.b16 %v273, %v269
    %v326 = vpack.c.b16 %v274, %v270
    %v327 = vpack.c.b16 %v275, %v271
    %v328 = vpack.c.b16 %v280, %v276
    %v329 = vpack.c.b16 %v281, %v277
    %v330 = vpack.c.b16 %v282, %v278
    %v331 = vpack.c.b16 %v283, %v279
    %v332 = vpack.c.b16 %v288, %v284
    %v333 = vpack.c.b16 %v289, %v285
    %v334 = vpack.c.b16 %v290, %v286
    %v335 = vpack.c.b16 %v291, %v287
    %v336 = vpack.c.b16 %v296, %v292
    %v337 = vpack.c.b16 %v297, %v293
    %v338 = vpack.c.b16 %v298, %v294
    %v339 = vpack.c.b16 %v299, %v295
    %v340 = vpack.c.b16 %v304, %v300
    %v341 = vpack.c.b16 %v305, %v301
    %v342 = vpack.c.b16 %v306, %v302
    %v343 = vpack.c.b16 %v307, %v303
    %v344 = vpack.c.b16 %v312, %v308
    %v345 = vpack.c.b16 %v313, %v309
    %v346 = vpack.c.b16 %v314, %v310
    %v347 = vpack.c.b16 %v315, %v311
    %380 = vmatprep.subr.bf16.mxu0 %v317
    %381 = vmatpush1.bf16.msra.mxu0 %v316
    %382 = vmatprep.subr.bf16.mxu0 %v321
    %383 = vmatpush1.bf16.msra.mxu0 %v320
    %384 = vmatprep.subr.bf16.mxu0 %v325
    %385 = vmatpush1.bf16.msra.mxu0 %v324
    %386 = vmatprep.subr.bf16.mxu0 %v329
    %387 = vmatpush1.bf16.msra.mxu0 %v328
    %388 = vmatprep.subr.bf16.mxu0 %v333
    %389 = vmatpush1.bf16.msra.mxu0 %v332
    %390 = vmatprep.subr.bf16.mxu0 %v337
    %391 = vmatpush1.bf16.msra.mxu0 %v336
    %392 = vmatprep.subr.bf16.mxu0 %v341
    %393 = vmatpush1.bf16.msra.mxu0 %v340
    %394 = vmatprep.subr.bf16.mxu0 %v345
    %395 = vmatpush1.bf16.msra.mxu0 %v344
    %396 = vmatprep.subr.bf16.mxu0 0
    %397 = vmatpush1.bf16.msra.mxu0 0
    %398 = vmatprep.subr.bf16.mxu0 0
    %399 = vmatpush1.bf16.msra.mxu0 0
    %400 = vmatprep.subr.bf16.mxu0 0
    %401 = vmatpush1.bf16.msra.mxu0 0
    %402 = vmatprep.subr.bf16.mxu0 0
    %403 = vmatpush1.bf16.msra.mxu0 0
    %404 = vmatprep.subr.bf16.mxu0 0
    %405 = vmatpush1.bf16.msra.mxu0 0
    %406 = vmatprep.subr.bf16.mxu0 0
    %407 = vmatpush1.bf16.msra.mxu0 0
    %408 = vmatprep.subr.bf16.mxu0 0
    %409 = vmatpush1.bf16.msra.mxu0 0
    %410 = vmatprep.subr.bf16.mxu0 0
    %411 = vmatpush1.bf16.msra.mxu0 0
    %412 = vmatprep.mubr.bf16.mxu0 0
    %413 = vmatmul.mubr.bf16.gmra.mrb[0].mxu0 %v218
    %v414 = vpop.f32.mrb[0].mxu0
    %v415 = vadd.f32 0.0, %v414
    %v416 = vpop.f32.mrb[0].mxu0
    %v417 = vadd.f32 0.0, %v416
    %v418 = vpop.f32.mrb[0].mxu0
    %v419 = vadd.f32 0.0, %v418
    %v420 = vpop.f32.mrb[0].mxu0
    %v421 = vadd.f32 0.0, %v420
    %422 = vdwg.mxu0
    %423 = vmatprep.subr.bf16.mxu0 %v319
    %424 = vmatpush1.bf16.msra.mxu0 %v318
    %425 = vmatprep.subr.bf16.mxu0 %v323
    %426 = vmatpush1.bf16.msra.mxu0 %v322
    %427 = vmatprep.subr.bf16.mxu0 %v327
    %428 = vmatpush1.bf16.msra.mxu0 %v326
    %429 = vmatprep.subr.bf16.mxu0 %v331
    %430 = vmatpush1.bf16.msra.mxu0 %v330
    %431 = vmatprep.subr.bf16.mxu0 %v335
    %432 = vmatpush1.bf16.msra.mxu0 %v334
    %433 = vmatprep.subr.bf16.mxu0 %v339
    %434 = vmatpush1.bf16.msra.mxu0 %v338
    %435 = vmatprep.subr.bf16.mxu0 %v343
    %436 = vmatpush1.bf16.msra.mxu0 %v342
    %437 = vmatprep.subr.bf16.mxu0 %v347
    %438 = vmatpush1.bf16.msra.mxu0 %v346
    %439 = vmatprep.subr.bf16.mxu0 0
    %440 = vmatpush1.bf16.msra.mxu0 0
    %441 = vmatprep.subr.bf16.mxu0 0
    %442 = vmatpush1.bf16.msra.mxu0 0
    %443 = vmatprep.subr.bf16.mxu0 0
    %444 = vmatpush1.bf16.msra.mxu0 0
    %445 = vmatprep.subr.bf16.mxu0 0
    %446 = vmatpush1.bf16.msra.mxu0 0
    %447 = vmatprep.subr.bf16.mxu0 0
    %448 = vmatpush1.bf16.msra.mxu0 0
    %449 = vmatprep.subr.bf16.mxu0 0
    %450 = vmatpush1.bf16.msra.mxu0 0
    %451 = vmatprep.subr.bf16.mxu0 0
    %452 = vmatpush1.bf16.msra.mxu0 0
    %453 = vmatprep.subr.bf16.mxu0 0
    %454 = vmatpush1.bf16.msra.mxu0 0
    %455 = vmatprep.mubr.bf16.mxu0 0
    %456 = vmatmul.mubr.bf16.gmra.mrb[0].mxu0 %v218
    %v457 = vpop.f32.mrb[0].mxu0
    %v458 = vadd.f32 0.0, %v457
    %v459 = vpop.f32.mrb[0].mxu0
    %v460 = vadd.f32 0.0, %v459
    %v461 = vpop.f32.mrb[0].mxu0
    %v462 = vadd.f32 0.0, %v461
    %v463 = vpop.f32.mrb[0].mxu0
    %v464 = vadd.f32 0.0, %v463
    %465 = vdwg.mxu0
    %v466 = vpack.c.bf16 %v419, %v415
    %v467 = vpack.c.bf16 %v421, %v417
    %v468 = vpack.c.bf16 %v462, %v458
    %v469 = vpack.c.bf16 %v464, %v460
    %v470 = vtanh.bf16.pop %v466
    %v471 = vtanh.bf16.pop %v467
    %v472 = vtanh.bf16.pop %v468
    %v473 = vtanh.bf16.pop %v469
    %v474 = vld [vmem:[#allocation7] sm:$0xff]
    %v475 = vld [vmem:[#allocation7 + $0x8] sm:$0xf]
    %v476 = vld [vmem:[#allocation7 + $0xc] sm:$0xff]
    %v477 = vld [vmem:[#allocation7 + $0x14] sm:$0xf]
    %v478 = vld [vmem:[#allocation7 + $0x18] sm:$0xff]
    %v479 = vld [vmem:[#allocation7 + $0x20] sm:$0xf]
    %v480 = vld [vmem:[#allocation7 + $0x24] sm:$0xff]
    %v481 = vld [vmem:[#allocation7 + $0x2c] sm:$0xf]
    %v482 = vld [vmem:[#allocation7 + $0x30] sm:$0xff]
    %v483 = vld [vmem:[#allocation7 + $0x38] sm:$0xf]
    %v484 = vld [vmem:[#allocation7 + $0x3c] sm:$0xff]
    %v485 = vld [vmem:[#allocation7 + $0x44] sm:$0xf]
    %v486 = vld [vmem:[#allocation7 + $0x48] sm:$0xff]
    %v487 = vld [vmem:[#allocation7 + $0x50] sm:$0xf]
    %v488 = vld [vmem:[#allocation7 + $0x54] sm:$0xff]
    %v489 = vld [vmem:[#allocation7 + $0x5c] sm:$0xf]
    %v490 = vld [vmem:[#allocation7 + $0x60] sm:$0xff]
    %v491 = vld [vmem:[#allocation7 + $0x68] sm:$0xf]
    %v492 = vld [vmem:[#allocation7 + $0x6c] sm:$0xff]
    %v493 = vld [vmem:[#allocation7 + $0x74] sm:$0xf]
    %v494 = vld [vmem:[#allocation7 + $0x78] sm:$0xff]
    %v495 = vld [vmem:[#allocation7 + $0x80] sm:$0xf]
    %v496 = vld [vmem:[#allocation7 + $0x84] sm:$0xff]
    %v497 = vld [vmem:[#allocation7 + $0x8c] sm:$0xf]
    %v498 = vld [vmem:[#allocation7 + $0x90] sm:$0xff]
    %v499 = vld [vmem:[#allocation7 + $0x98] sm:$0xf]
    %v500 = vld [vmem:[#allocation7 + $0x9c] sm:$0xff]
    %v501 = vld [vmem:[#allocation7 + $0xa4] sm:$0xf]
    %v502 = vld [vmem:[#allocation7 + $0xa8] sm:$0xff]
    %v503 = vld [vmem:[#allocation7 + $0xb0] sm:$0xf]
    %v504 = vld [vmem:[#allocation7 + $0xb4] sm:$0xff]
    %v505 = vld [vmem:[#allocation7 + $0xbc] sm:$0xf]
    %v506 = vld [vmem:[#allocation7 + $0xc0] sm:$0xff]
    %v507 = vld [vmem:[#allocation7 + $0xc8] sm:$0xf]
    %v508 = vld [vmem:[#allocation7 + $0xcc] sm:$0xff]
    %v509 = vld [vmem:[#allocation7 + $0xd4] sm:$0xf]
    %v510 = vld [vmem:[#allocation7 + $0xd8] sm:$0xff]
    %v511 = vld [vmem:[#allocation7 + $0xe0] sm:$0xf]
    %v512 = vld [vmem:[#allocation7 + $0xe4] sm:$0xff]
    %v513 = vld [vmem:[#allocation7 + $0xec] sm:$0xf]
    %v514 = vld [vmem:[#allocation7 + $0xf0] sm:$0xff]
    %v515 = vld [vmem:[#allocation7 + $0xf8] sm:$0xf]
    %v516 = vld [vmem:[#allocation7 + $0xfc] sm:$0xff]
    %v517 = vld [vmem:[#allocation7 + $0x104] sm:$0xf]
    %v518 = vld [vmem:[#allocation7 + $0x108] sm:$0xff]
    %v519 = vld [vmem:[#allocation7 + $0x110] sm:$0xf]
    %v520 = vld [vmem:[#allocation7 + $0x114] sm:$0xff]
    %v521 = vld [vmem:[#allocation7 + $0x11c] sm:$0xf]
    %v522 = vld [vmem:[#allocation7 + $0x120] sm:$0xff]
    %v523 = vld [vmem:[#allocation7 + $0x128] sm:$0xf]
    %v524 = vld [vmem:[#allocation7 + $0x12c] sm:$0xff]
    %v525 = vld [vmem:[#allocation7 + $0x134] sm:$0xf]
    %v526 = vld [vmem:[#allocation7 + $0x138] sm:$0xff]
    %v527 = vld [vmem:[#allocation7 + $0x140] sm:$0xf]
    %v528 = vld [vmem:[#allocation7 + $0x144] sm:$0xff]
    %v529 = vld [vmem:[#allocation7 + $0x14c] sm:$0xf]
    %v530 = vld [vmem:[#allocation7 + $0x150] sm:$0xff]
    %v531 = vld [vmem:[#allocation7 + $0x158] sm:$0xf]
    %v532 = vld [vmem:[#allocation7 + $0x15c] sm:$0xff]
    %v533 = vld [vmem:[#allocation7 + $0x164] sm:$0xf]
    %v534 = vld [vmem:[#allocation7 + $0x168] sm:$0xff]
    %v535 = vld [vmem:[#allocation7 + $0x170] sm:$0xf]
    %v536 = vld [vmem:[#allocation7 + $0x174] sm:$0xff]
    %v537 = vld [vmem:[#allocation7 + $0x17c] sm:$0xf]
    %v538 = vld [vmem:[#allocation7 + $0x180] sm:$0xff]
    %v539 = vld [vmem:[#allocation7 + $0x188] sm:$0xf]
    %v540 = vld [vmem:[#allocation7 + $0x18c] sm:$0xff]
    %v541 = vld [vmem:[#allocation7 + $0x194] sm:$0xf]
    %v542 = vld [vmem:[#allocation7 + $0x198] sm:$0xff]
    %v543 = vld [vmem:[#allocation7 + $0x1a0] sm:$0xf]
    %v544 = vld [vmem:[#allocation7 + $0x1a4] sm:$0xff]
    %v545 = vld [vmem:[#allocation7 + $0x1ac] sm:$0xf]
    %v546 = vld [vmem:[#allocation7 + $0x1b0] sm:$0xff]
    %v547 = vld [vmem:[#allocation7 + $0x1b8] sm:$0xf]
    %v548 = vld [vmem:[#allocation7 + $0x1bc] sm:$0xff]
    %v549 = vld [vmem:[#allocation7 + $0x1c4] sm:$0xf]
    %v550 = vld [vmem:[#allocation7 + $0x1c8] sm:$0xff]
    %v551 = vld [vmem:[#allocation7 + $0x1d0] sm:$0xf]
    %v552 = vld [vmem:[#allocation7 + $0x1d4] sm:$0xff]
    %v553 = vld [vmem:[#allocation7 + $0x1dc] sm:$0xf]
    %v554 = vld [vmem:[#allocation7 + $0x1e0] sm:$0xff]
    %v555 = vld [vmem:[#allocation7 + $0x1e8] sm:$0xf]
    %v556 = vld [vmem:[#allocation7 + $0x1ec] sm:$0xff]
    %v557 = vld [vmem:[#allocation7 + $0x1f4] sm:$0xf]
    %v558 = vld [vmem:[#allocation7 + $0x1f8] sm:$0xff]
    %v559 = vld [vmem:[#allocation7 + $0x200] sm:$0xf]
    %v560 = vld [vmem:[#allocation7 + $0x204] sm:$0xff]
    %v561 = vld [vmem:[#allocation7 + $0x20c] sm:$0xf]
    %v562 = vld [vmem:[#allocation7 + $0x210] sm:$0xff]
    %v563 = vld [vmem:[#allocation7 + $0x218] sm:$0xf]
    %v564 = vld [vmem:[#allocation7 + $0x21c] sm:$0xff]
    %v565 = vld [vmem:[#allocation7 + $0x224] sm:$0xf]
    %v566 = vld [vmem:[#allocation7 + $0x228] sm:$0xff]
    %v567 = vld [vmem:[#allocation7 + $0x230] sm:$0xf]
    %v568 = vld [vmem:[#allocation7 + $0x234] sm:$0xff]
    %v569 = vld [vmem:[#allocation7 + $0x23c] sm:$0xf]
    %v570 = vld [vmem:[#allocation7 + $0x240] sm:$0xff]
    %v571 = vld [vmem:[#allocation7 + $0x248] sm:$0xf]
    %v572 = vld [vmem:[#allocation7 + $0x24c] sm:$0xff]
    %v573 = vld [vmem:[#allocation7 + $0x254] sm:$0xf]
    %v574 = vld [vmem:[#allocation7 + $0x258] sm:$0xff]
    %v575 = vld [vmem:[#allocation7 + $0x260] sm:$0xf]
    %v576 = vld [vmem:[#allocation7 + $0x264] sm:$0xff]
    %v577 = vld [vmem:[#allocation7 + $0x26c] sm:$0xf]
    %v578 = vld [vmem:[#allocation7 + $0x270] sm:$0xff]
    %v579 = vld [vmem:[#allocation7 + $0x278] sm:$0xf]
    %v580 = vld [vmem:[#allocation7 + $0x27c] sm:$0xff]
    %v581 = vld [vmem:[#allocation7 + $0x284] sm:$0xf]
    %v582 = vld [vmem:[#allocation7 + $0x288] sm:$0xff]
    %v583 = vld [vmem:[#allocation7 + $0x290] sm:$0xf]
    %v584 = vld [vmem:[#allocation7 + $0x294] sm:$0xff]
    %v585 = vld [vmem:[#allocation7 + $0x29c] sm:$0xf]
    %v586 = vld [vmem:[#allocation7 + $0x2a0] sm:$0xff]
    %v587 = vld [vmem:[#allocation7 + $0x2a8] sm:$0xf]
    %v588 = vld [vmem:[#allocation7 + $0x2ac] sm:$0xff]
    %v589 = vld [vmem:[#allocation7 + $0x2b4] sm:$0xf]
    %v590 = vld [vmem:[#allocation7 + $0x2b8] sm:$0xff]
    %v591 = vld [vmem:[#allocation7 + $0x2c0] sm:$0xf]
    %v592 = vld [vmem:[#allocation7 + $0x2c4] sm:$0xff]
    %v593 = vld [vmem:[#allocation7 + $0x2cc] sm:$0xf]
    %v594 = vld [vmem:[#allocation7 + $0x2d0] sm:$0xff]
    %v595 = vld [vmem:[#allocation7 + $0x2d8] sm:$0xf]
    %v596 = vld [vmem:[#allocation7 + $0x2dc] sm:$0xff]
    %v597 = vld [vmem:[#allocation7 + $0x2e4] sm:$0xf]
    %v598 = vld [vmem:[#allocation7 + $0x2e8] sm:$0xff]
    %v599 = vld [vmem:[#allocation7 + $0x2f0] sm:$0xf]
    %v600 = vld [vmem:[#allocation7 + $0x2f4] sm:$0xff]
    %v601 = vld [vmem:[#allocation7 + $0x2fc] sm:$0xf]
    %v602 = vlaneseq
    %v603 = vshrl.u32 %v602, 7
    %v604 = vsub.s32 0, %v603
    %v605 = vrot.slane %v176, %v604
    %v606 = vlaneseq
    %v607 = vshrl.u32 %v606, 7
    %v608 = vsub.s32 0, %v607
    %v609 = vrot.slane %v177, %v608
    %v610 = vlaneseq
    %v611 = vshrl.u32 %v610, 7
    %v612 = vsub.s32 0, %v611
    %v613 = vrot.slane %v178, %v612
    %v742 = vunpack.c.l.b16 %v474
    %v743 = vunpack.c.h.b16 %v474
    %v744 = vunpack.c.l.b16 %v475
    %v745 = vunpack.c.l.b16 %v476
    %v746 = vunpack.c.h.b16 %v476
    %v747 = vunpack.c.l.b16 %v477
    %v748 = vunpack.c.l.b16 %v478
    %v749 = vunpack.c.h.b16 %v478
    %v750 = vunpack.c.l.b16 %v479
    %v751 = vunpack.c.l.b16 %v480
    %v752 = vunpack.c.h.b16 %v480
    %v753 = vunpack.c.l.b16 %v481
    %v754 = vunpack.c.l.b16 %v482
    %v755 = vunpack.c.h.b16 %v482
    %v756 = vunpack.c.l.b16 %v483
    %v757 = vunpack.c.l.b16 %v484
    %v758 = vunpack.c.h.b16 %v484
    %v759 = vunpack.c.l.b16 %v485
    %v760 = vunpack.c.l.b16 %v486
    %v761 = vunpack.c.h.b16 %v486
    %v762 = vunpack.c.l.b16 %v487
    %v763 = vunpack.c.l.b16 %v488
    %v764 = vunpack.c.h.b16 %v488
    %v765 = vunpack.c.l.b16 %v489
    %v766 = vunpack.c.l.b16 %v490
    %v767 = vunpack.c.h.b16 %v490
    %v768 = vunpack.c.l.b16 %v491
    %v769 = vunpack.c.l.b16 %v492
    %v770 = vunpack.c.h.b16 %v492
    %v771 = vunpack.c.l.b16 %v493
    %v772 = vunpack.c.l.b16 %v494
    %v773 = vunpack.c.h.b16 %v494
    %v774 = vunpack.c.l.b16 %v495
    %v775 = vunpack.c.l.b16 %v496
    %v776 = vunpack.c.h.b16 %v496
    %v777 = vunpack.c.l.b16 %v497
    %v778 = vunpack.c.l.b16 %v498
    %v779 = vunpack.c.h.b16 %v498
    %v780 = vunpack.c.l.b16 %v499
    %v781 = vunpack.c.l.b16 %v500
    %v782 = vunpack.c.h.b16 %v500
    %v783 = vunpack.c.l.b16 %v501
    %v784 = vunpack.c.l.b16 %v502
    %v785 = vunpack.c.h.b16 %v502
    %v786 = vunpack.c.l.b16 %v503
    %v787 = vunpack.c.l.b16 %v504
    %v788 = vunpack.c.h.b16 %v504
    %v789 = vunpack.c.l.b16 %v505
    %v790 = vunpack.c.l.b16 %v506
    %v791 = vunpack.c.h.b16 %v506
    %v792 = vunpack.c.l.b16 %v507
    %v793 = vunpack.c.l.b16 %v508
    %v794 = vunpack.c.h.b16 %v508
    %v795 = vunpack.c.l.b16 %v509
    %v796 = vunpack.c.l.b16 %v510
    %v797 = vunpack.c.h.b16 %v510
    %v798 = vunpack.c.l.b16 %v511
    %v799 = vunpack.c.l.b16 %v512
    %v800 = vunpack.c.h.b16 %v512
    %v801 = vunpack.c.l.b16 %v513
    %v802 = vunpack.c.l.b16 %v514
    %v803 = vunpack.c.h.b16 %v514
    %v804 = vunpack.c.l.b16 %v515
    %v805 = vunpack.c.l.b16 %v516
    %v806 = vunpack.c.h.b16 %v516
    %v807 = vunpack.c.l.b16 %v517
    %v808 = vunpack.c.l.b16 %v518
    %v809 = vunpack.c.h.b16 %v518
    %v810 = vunpack.c.l.b16 %v519
    %v811 = vunpack.c.l.b16 %v520
    %v812 = vunpack.c.h.b16 %v520
    %v813 = vunpack.c.l.b16 %v521
    %v814 = vunpack.c.l.b16 %v522
    %v815 = vunpack.c.h.b16 %v522
    %v816 = vunpack.c.l.b16 %v523
    %v817 = vunpack.c.l.b16 %v524
    %v818 = vunpack.c.h.b16 %v524
    %v819 = vunpack.c.l.b16 %v525
    %v820 = vunpack.c.l.b16 %v526
    %v821 = vunpack.c.h.b16 %v526
    %v822 = vunpack.c.l.b16 %v527
    %v823 = vunpack.c.l.b16 %v528
    %v824 = vunpack.c.h.b16 %v528
    %v825 = vunpack.c.l.b16 %v529
    %v826 = vunpack.c.l.b16 %v530
    %v827 = vunpack.c.h.b16 %v530
    %v828 = vunpack.c.l.b16 %v531
    %v829 = vunpack.c.l.b16 %v532
    %v830 = vunpack.c.h.b16 %v532
    %v831 = vunpack.c.l.b16 %v533
    %v832 = vunpack.c.l.b16 %v534
    %v833 = vunpack.c.h.b16 %v534
    %v834 = vunpack.c.l.b16 %v535
    %v835 = vunpack.c.l.b16 %v536
    %v836 = vunpack.c.h.b16 %v536
    %v837 = vunpack.c.l.b16 %v537
    %v838 = vunpack.c.l.b16 %v538
    %v839 = vunpack.c.h.b16 %v538
    %v840 = vunpack.c.l.b16 %v539
    %v841 = vunpack.c.l.b16 %v540
    %v842 = vunpack.c.h.b16 %v540
    %v843 = vunpack.c.l.b16 %v541
    %v844 = vunpack.c.l.b16 %v542
    %v845 = vunpack.c.h.b16 %v542
    %v846 = vunpack.c.l.b16 %v543
    %v847 = vunpack.c.l.b16 %v544
    %v848 = vunpack.c.h.b16 %v544
    %v849 = vunpack.c.l.b16 %v545
    %v850 = vunpack.c.l.b16 %v546
    %v851 = vunpack.c.h.b16 %v546
    %v852 = vunpack.c.l.b16 %v547
    %v853 = vunpack.c.l.b16 %v548
    %v854 = vunpack.c.h.b16 %v548
    %v855 = vunpack.c.l.b16 %v549
    %v856 = vunpack.c.l.b16 %v550
    %v857 = vunpack.c.h.b16 %v550
    %v858 = vunpack.c.l.b16 %v551
    %v859 = vunpack.c.l.b16 %v552
    %v860 = vunpack.c.h.b16 %v552
    %v861 = vunpack.c.l.b16 %v553
    %v862 = vunpack.c.l.b16 %v554
    %v863 = vunpack.c.h.b16 %v554
    %v864 = vunpack.c.l.b16 %v555
    %v865 = vunpack.c.l.b16 %v556
    %v866 = vunpack.c.h.b16 %v556
    %v867 = vunpack.c.l.b16 %v557
    %v868 = vunpack.c.l.b16 %v558
    %v869 = vunpack.c.h.b16 %v558
    %v870 = vunpack.c.l.b16 %v559
    %v871 = vunpack.c.l.b16 %v560
    %v872 = vunpack.c.h.b16 %v560
    %v873 = vunpack.c.l.b16 %v561
    %v874 = vunpack.c.l.b16 %v562
    %v875 = vunpack.c.h.b16 %v562
    %v876 = vunpack.c.l.b16 %v563
    %v877 = vunpack.c.l.b16 %v564
    %v878 = vunpack.c.h.b16 %v564
    %v879 = vunpack.c.l.b16 %v565
    %v880 = vunpack.c.l.b16 %v566
    %v881 = vunpack.c.h.b16 %v566
    %v882 = vunpack.c.l.b16 %v567
    %v883 = vunpack.c.l.b16 %v568
    %v884 = vunpack.c.h.b16 %v568
    %v885 = vunpack.c.l.b16 %v569
    %v886 = vunpack.c.l.b16 %v570
    %v887 = vunpack.c.h.b16 %v570
    %v888 = vunpack.c.l.b16 %v571
    %v889 = vunpack.c.l.b16 %v572
    %v890 = vunpack.c.h.b16 %v572
    %v891 = vunpack.c.l.b16 %v573
    %v892 = vunpack.c.l.b16 %v574
    %v893 = vunpack.c.h.b16 %v574
    %v894 = vunpack.c.l.b16 %v575
    %v895 = vunpack.c.l.b16 %v576
    %v896 = vunpack.c.h.b16 %v576
    %v897 = vunpack.c.l.b16 %v577
    %v898 = vunpack.c.l.b16 %v578
    %v899 = vunpack.c.h.b16 %v578
    %v900 = vunpack.c.l.b16 %v579
    %v901 = vunpack.c.l.b16 %v580
    %v902 = vunpack.c.h.b16 %v580
    %v903 = vunpack.c.l.b16 %v581
    %v904 = vunpack.c.l.b16 %v582
    %v905 = vunpack.c.h.b16 %v582
    %v906 = vunpack.c.l.b16 %v583
    %v907 = vunpack.c.l.b16 %v584
    %v908 = vunpack.c.h.b16 %v584
    %v909 = vunpack.c.l.b16 %v585
    %v910 = vunpack.c.l.b16 %v586
    %v911 = vunpack.c.h.b16 %v586
    %v912 = vunpack.c.l.b16 %v587
    %v913 = vunpack.c.l.b16 %v588
    %v914 = vunpack.c.h.b16 %v588
    %v915 = vunpack.c.l.b16 %v589
    %v916 = vunpack.c.l.b16 %v590
    %v917 = vunpack.c.h.b16 %v590
    %v918 = vunpack.c.l.b16 %v591
    %v919 = vunpack.c.l.b16 %v592
    %v920 = vunpack.c.h.b16 %v592
    %v921 = vunpack.c.l.b16 %v593
    %v922 = vunpack.c.l.b16 %v594
    %v923 = vunpack.c.h.b16 %v594
    %v924 = vunpack.c.l.b16 %v595
    %v925 = vunpack.c.l.b16 %v596
    %v926 = vunpack.c.h.b16 %v596
    %v927 = vunpack.c.l.b16 %v597
    %v928 = vunpack.c.l.b16 %v598
    %v929 = vunpack.c.h.b16 %v598
    %v930 = vunpack.c.l.b16 %v599
    %v931 = vunpack.c.l.b16 %v600
    %v932 = vunpack.c.h.b16 %v600
    %v933 = vunpack.c.l.b16 %v601
    %v934 = vpack.c.b16 %v745, %v742
    %v935 = vpack.c.b16 %v746, %v743
    %v936 = vpack.c.b16 %v747, %v744
    %v937 = vpack.c.b16 %v751, %v748
    %v938 = vpack.c.b16 %v752, %v749
    %v939 = vpack.c.b16 %v753, %v750
    %v940 = vpack.c.b16 %v757, %v754
    %v941 = vpack.c.b16 %v758, %v755
    %v942 = vpack.c.b16 %v759, %v756
    %v943 = vpack.c.b16 %v763, %v760
    %v944 = vpack.c.b16 %v764, %v761
    %v945 = vpack.c.b16 %v765, %v762
    %v946 = vpack.c.b16 %v769, %v766
    %v947 = vpack.c.b16 %v770, %v767
    %v948 = vpack.c.b16 %v771, %v768
    %v949 = vpack.c.b16 %v775, %v772
    %v950 = vpack.c.b16 %v776, %v773
    %v951 = vpack.c.b16 %v777, %v774
    %v952 = vpack.c.b16 %v781, %v778
    %v953 = vpack.c.b16 %v782, %v779
    %v954 = vpack.c.b16 %v783, %v780
    %v955 = vpack.c.b16 %v787, %v784
    %v956 = vpack.c.b16 %v788, %v785
    %v957 = vpack.c.b16 %v789, %v786
    %v958 = vpack.c.b16 %v793, %v790
    %v959 = vpack.c.b16 %v794, %v791
    %v960 = vpack.c.b16 %v795, %v792
    %v961 = vpack.c.b16 %v799, %v796
    %v962 = vpack.c.b16 %v800, %v797
    %v963 = vpack.c.b16 %v801, %v798
    %v964 = vpack.c.b16 %v805, %v802
    %v965 = vpack.c.b16 %v806, %v803
    %v966 = vpack.c.b16 %v807, %v804
    %v967 = vpack.c.b16 %v811, %v808
    %v968 = vpack.c.b16 %v812, %v809
    %v969 = vpack.c.b16 %v813, %v810
    %v970 = vpack.c.b16 %v817, %v814
    %v971 = vpack.c.b16 %v818, %v815
    %v972 = vpack.c.b16 %v819, %v816
    %v973 = vpack.c.b16 %v823, %v820
    %v974 = vpack.c.b16 %v824, %v821
    %v975 = vpack.c.b16 %v825, %v822
    %v976 = vpack.c.b16 %v829, %v826
    %v977 = vpack.c.b16 %v830, %v827
    %v978 = vpack.c.b16 %v831, %v828
    %v979 = vpack.c.b16 %v835, %v832
    %v980 = vpack.c.b16 %v836, %v833
    %v981 = vpack.c.b16 %v837, %v834
    %v982 = vpack.c.b16 %v841, %v838
    %v983 = vpack.c.b16 %v842, %v839
    %v984 = vpack.c.b16 %v843, %v840
    %v985 = vpack.c.b16 %v847, %v844
    %v986 = vpack.c.b16 %v848, %v845
    %v987 = vpack.c.b16 %v849, %v846
    %v988 = vpack.c.b16 %v853, %v850
    %v989 = vpack.c.b16 %v854, %v851
    %v990 = vpack.c.b16 %v855, %v852
    %v991 = vpack.c.b16 %v859, %v856
    %v992 = vpack.c.b16 %v860, %v857
    %v993 = vpack.c.b16 %v861, %v858
    %v994 = vpack.c.b16 %v865, %v862
    %v995 = vpack.c.b16 %v866, %v863
    %v996 = vpack.c.b16 %v867, %v864
    %v997 = vpack.c.b16 %v871, %v868
    %v998 = vpack.c.b16 %v872, %v869
    %v999 = vpack.c.b16 %v873, %v870
    %v1000 = vpack.c.b16 %v877, %v874
    %v1001 = vpack.c.b16 %v878, %v875
    %v1002 = vpack.c.b16 %v879, %v876
    %v1003 = vpack.c.b16 %v883, %v880
    %v1004 = vpack.c.b16 %v884, %v881
    %v1005 = vpack.c.b16 %v885, %v882
    %v1006 = vpack.c.b16 %v889, %v886
    %v1007 = vpack.c.b16 %v890, %v887
    %v1008 = vpack.c.b16 %v891, %v888
    %v1009 = vpack.c.b16 %v895, %v892
    %v1010 = vpack.c.b16 %v896, %v893
    %v1011 = vpack.c.b16 %v897, %v894
    %v1012 = vpack.c.b16 %v901, %v898
    %v1013 = vpack.c.b16 %v902, %v899
    %v1014 = vpack.c.b16 %v903, %v900
    %v1015 = vpack.c.b16 %v907, %v904
    %v1016 = vpack.c.b16 %v908, %v905
    %v1017 = vpack.c.b16 %v909, %v906
    %v1018 = vpack.c.b16 %v913, %v910
    %v1019 = vpack.c.b16 %v914, %v911
    %v1020 = vpack.c.b16 %v915, %v912
    %v1021 = vpack.c.b16 %v919, %v916
    %v1022 = vpack.c.b16 %v920, %v917
    %v1023 = vpack.c.b16 %v921, %v918
    %v1024 = vpack.c.b16 %v925, %v922
    %v1025 = vpack.c.b16 %v926, %v923
    %v1026 = vpack.c.b16 %v927, %v924
    %v1027 = vpack.c.b16 %v931, %v928
    %v1028 = vpack.c.b16 %v932, %v929
    %v1029 = vpack.c.b16 %v933, %v930
    %1126 = vmatprep.subr.bf16.mxu0 %v935
    %1127 = vmatpush1.bf16.msra.mxu0 %v934
    %1128 = vmatprep.subr.bf16.mxu0 %v938
    %1129 = vmatpush1.bf16.msra.mxu0 %v937
    %1130 = vmatprep.subr.bf16.mxu0 %v941
    %1131 = vmatpush1.bf16.msra.mxu0 %v940
    %1132 = vmatprep.subr.bf16.mxu0 %v944
    %1133 = vmatpush1.bf16.msra.mxu0 %v943
    %1134 = vmatprep.subr.bf16.mxu0 %v947
    %1135 = vmatpush1.bf16.msra.mxu0 %v946
    %1136 = vmatprep.subr.bf16.mxu0 %v950
    %1137 = vmatpush1.bf16.msra.mxu0 %v949
    %1138 = vmatprep.subr.bf16.mxu0 %v953
    %1139 = vmatpush1.bf16.msra.mxu0 %v952
    %1140 = vmatprep.subr.bf16.mxu0 %v956
    %1141 = vmatpush1.bf16.msra.mxu0 %v955
    %1142 = vmatprep.subr.bf16.mxu0 %v959
    %1143 = vmatpush1.bf16.msra.mxu0 %v958
    %1144 = vmatprep.subr.bf16.mxu0 %v962
    %1145 = vmatpush1.bf16.msra.mxu0 %v961
    %1146 = vmatprep.subr.bf16.mxu0 %v965
    %1147 = vmatpush1.bf16.msra.mxu0 %v964
    %1148 = vmatprep.subr.bf16.mxu0 %v968
    %1149 = vmatpush1.bf16.msra.mxu0 %v967
    %1150 = vmatprep.subr.bf16.mxu0 %v971
    %1151 = vmatpush1.bf16.msra.mxu0 %v970
    %1152 = vmatprep.subr.bf16.mxu0 %v974
    %1153 = vmatpush1.bf16.msra.mxu0 %v973
    %1154 = vmatprep.subr.bf16.mxu0 %v977
    %1155 = vmatpush1.bf16.msra.mxu0 %v976
    %1156 = vmatprep.subr.bf16.mxu0 %v980
    %1157 = vmatpush1.bf16.msra.mxu0 %v979
    %1158 = vmatprep.mubr.bf16.mxu0 %v471
    %1159 = vmatmul.mubr.bf16.gmra.mrb[0].mxu0 %v470
    %v1160 = vpop.f32.mrb[0].mxu0
    %v1161 = vadd.f32 %v605, %v1160
    %v1162 = vpop.f32.mrb[0].mxu0
    %v1163 = vadd.f32 %v609, %v1162
    %v1164 = vpop.f32.mrb[0].mxu0
    %v1165 = vadd.f32 %v605, %v1164
    %v1166 = vpop.f32.mrb[0].mxu0
    %v1167 = vadd.f32 %v609, %v1166
    %1168 = vdwg.mxu0
    %1169 = vmatprep.subr.bf16.mxu0 %v983
    %1170 = vmatpush1.bf16.msra.mxu0 %v982
    %1171 = vmatprep.subr.bf16.mxu0 %v986
    %1172 = vmatpush1.bf16.msra.mxu0 %v985
    %1173 = vmatprep.subr.bf16.mxu0 %v989
    %1174 = vmatpush1.bf16.msra.mxu0 %v988
    %1175 = vmatprep.subr.bf16.mxu0 %v992
    %1176 = vmatpush1.bf16.msra.mxu0 %v991
    %1177 = vmatprep.subr.bf16.mxu0 %v995
    %1178 = vmatpush1.bf16.msra.mxu0 %v994
    %1179 = vmatprep.subr.bf16.mxu0 %v998
    %1180 = vmatpush1.bf16.msra.mxu0 %v997
    %1181 = vmatprep.subr.bf16.mxu0 %v1001
    %1182 = vmatpush1.bf16.msra.mxu0 %v1000
    %1183 = vmatprep.subr.bf16.mxu0 %v1004
    %1184 = vmatpush1.bf16.msra.mxu0 %v1003
    %1185 = vmatprep.subr.bf16.mxu0 %v1007
    %1186 = vmatpush1.bf16.msra.mxu0 %v1006
    %1187 = vmatprep.subr.bf16.mxu0 %v1010
    %1188 = vmatpush1.bf16.msra.mxu0 %v1009
    %1189 = vmatprep.subr.bf16.mxu0 %v1013
    %1190 = vmatpush1.bf16.msra.mxu0 %v1012
    %1191 = vmatprep.subr.bf16.mxu0 %v1016
    %1192 = vmatpush1.bf16.msra.mxu0 %v1015
    %1193 = vmatprep.subr.bf16.mxu0 %v1019
    %1194 = vmatpush1.bf16.msra.mxu0 %v1018
    %1195 = vmatprep.subr.bf16.mxu0 %v1022
    %1196 = vmatpush1.bf16.msra.mxu0 %v1021
    %1197 = vmatprep.subr.bf16.mxu0 %v1025
    %1198 = vmatpush1.bf16.msra.mxu0 %v1024
    %1199 = vmatprep.subr.bf16.mxu0 %v1028
    %1200 = vmatpush1.bf16.msra.mxu0 %v1027
    %1201 = vmatprep.mubr.bf16.mxu0 %v473
    %1202 = vmatmul.mubr.bf16.gmra.mrb[0].mxu0 %v472
    %v1203 = vpop.f32.mrb[0].mxu0
    %v1204 = vadd.f32 %v1161, %v1203
    %v1205 = vpop.f32.mrb[0].mxu0
    %v1206 = vadd.f32 %v1163, %v1205
    %v1207 = vpop.f32.mrb[0].mxu0
    %v1208 = vadd.f32 %v1165, %v1207
    %v1209 = vpop.f32.mrb[0].mxu0
    %v1210 = vadd.f32 %v1167, %v1209
    %1211 = vdwg.mxu0
    %1212 = vmatprep.subr.bf16.mxu0 0
    %1213 = vmatpush1.bf16.msra.mxu0 %v936
    %1214 = vmatprep.subr.bf16.mxu0 0
    %1215 = vmatpush1.bf16.msra.mxu0 %v939
    %1216 = vmatprep.subr.bf16.mxu0 0
    %1217 = vmatpush1.bf16.msra.mxu0 %v942
    %1218 = vmatprep.subr.bf16.mxu0 0
    %1219 = vmatpush1.bf16.msra.mxu0 %v945
    %1220 = vmatprep.subr.bf16.mxu0 0
    %1221 = vmatpush1.bf16.msra.mxu0 %v948
    %1222 = vmatprep.subr.bf16.mxu0 0
    %1223 = vmatpush1.bf16.msra.mxu0 %v951
    %1224 = vmatprep.subr.bf16.mxu0 0
    %1225 = vmatpush1.bf16.msra.mxu0 %v954
    %1226 = vmatprep.subr.bf16.mxu0 0
    %1227 = vmatpush1.bf16.msra.mxu0 %v957
    %1228 = vmatprep.subr.bf16.mxu0 0
    %1229 = vmatpush1.bf16.msra.mxu0 %v960
    %1230 = vmatprep.subr.bf16.mxu0 0
    %1231 = vmatpush1.bf16.msra.mxu0 %v963
    %1232 = vmatprep.subr.bf16.mxu0 0
    %1233 = vmatpush1.bf16.msra.mxu0 %v966
    %1234 = vmatprep.subr.bf16.mxu0 0
    %1235 = vmatpush1.bf16.msra.mxu0 %v969
    %1236 = vmatprep.subr.bf16.mxu0 0
    %1237 = vmatpush1.bf16.msra.mxu0 %v972
    %1238 = vmatprep.subr.bf16.mxu0 0
    %1239 = vmatpush1.bf16.msra.mxu0 %v975
    %1240 = vmatprep.subr.bf16.mxu0 0
    %1241 = vmatpush1.bf16.msra.mxu0 %v978
    %1242 = vmatprep.subr.bf16.mxu0 0
    %1243 = vmatpush1.bf16.msra.mxu0 %v981
    %1244 = vmatprep.mubr.bf16.mxu0 %v471
    %1245 = vmatmul.mubr.bf16.gmra.mrb[0].mxu0 %v470
    %v1246 = vpop.f32.mrb[0].mxu0
    %v1247 = vadd.f32 %v613, %v1246
    %v1248 = vpop.f32.mrb[0].mxu0
    %v1249 = vpop.f32.mrb[0].mxu0
    %v1250 = vadd.f32 %v613, %v1249
    %v1251 = vpop.f32.mrb[0].mxu0
    %1252 = vdwg.mxu0
    %1253 = vmatprep.subr.bf16.mxu0 0
    %1254 = vmatpush1.bf16.msra.mxu0 %v984
    %1255 = vmatprep.subr.bf16.mxu0 0
    %1256 = vmatpush1.bf16.msra.mxu0 %v987
    %1257 = vmatprep.subr.bf16.mxu0 0
    %1258 = vmatpush1.bf16.msra.mxu0 %v990
    %1259 = vmatprep.subr.bf16.mxu0 0
    %1260 = vmatpush1.bf16.msra.mxu0 %v993
    %1261 = vmatprep.subr.bf16.mxu0 0
    %1262 = vmatpush1.bf16.msra.mxu0 %v996
    %1263 = vmatprep.subr.bf16.mxu0 0
    %1264 = vmatpush1.bf16.msra.mxu0 %v999
    %1265 = vmatprep.subr.bf16.mxu0 0
    %1266 = vmatpush1.bf16.msra.mxu0 %v1002
    %1267 = vmatprep.subr.bf16.mxu0 0
    %1268 = vmatpush1.bf16.msra.mxu0 %v1005
    %1269 = vmatprep.subr.bf16.mxu0 0
    %1270 = vmatpush1.bf16.msra.mxu0 %v1008
    %1271 = vmatprep.subr.bf16.mxu0 0
    %1272 = vmatpush1.bf16.msra.mxu0 %v1011
    %1273 = vmatprep.subr.bf16.mxu0 0
    %1274 = vmatpush1.bf16.msra.mxu0 %v1014
    %1275 = vmatprep.subr.bf16.mxu0 0
    %1276 = vmatpush1.bf16.msra.mxu0 %v1017
    %1277 = vmatprep.subr.bf16.mxu0 0
    %1278 = vmatpush1.bf16.msra.mxu0 %v1020
    %1279 = vmatprep.subr.bf16.mxu0 0
    %1280 = vmatpush1.bf16.msra.mxu0 %v1023
    %1281 = vmatprep.subr.bf16.mxu0 0
    %1282 = vmatpush1.bf16.msra.mxu0 %v1026
    %1283 = vmatprep.subr.bf16.mxu0 0
    %1284 = vmatpush1.bf16.msra.mxu0 %v1029
    %1285 = vmatprep.mubr.bf16.mxu0 %v473
    %1286 = vmatmul.mubr.bf16.gmra.mrb[0].mxu0 %v472
    %v1287 = vpop.f32.mrb[0].mxu0
    %v1288 = vadd.f32 %v1247, %v1287
    %v1289 = vpop.f32.mrb[0].mxu0
    %v1290 = vpop.f32.mrb[0].mxu0
    %v1291 = vadd.f32 %v1250, %v1290
    %v1292 = vpop.f32.mrb[0].mxu0
    %1293 = vdwg.mxu0
    %v1294 = vpack.c.bf16 %v1208, %v1204
    %v1295 = vpack.c.bf16 %v1210, %v1206
    %v1296 = vpack.c.bf16 %v1291, %v1288
    %v1297 = vtanh.bf16.pop %v1294
    %v1298 = vtanh.bf16.pop %v1295
    %v1299 = vtanh.bf16.pop %v1296
    %v1300 = vld [vmem:[#allocation8] sm:$0xff]
    %v1301 = vld [vmem:[#allocation8 + $0x8] sm:$0xff]
    %v1302 = vld [vmem:[#allocation8 + $0x10] sm:$0xff]
    %v1303 = vld [vmem:[#allocation8 + $0x18] sm:$0xff]
    %v1304 = vld [vmem:[#allocation8 + $0x20] sm:$0xff]
    %v1305 = vld [vmem:[#allocation8 + $0x28] sm:$0xff]
    %v1306 = vld [vmem:[#allocation8 + $0x30] sm:$0xff]
    %v1307 = vld [vmem:[#allocation8 + $0x38] sm:$0xff]
    %v1308 = vld [vmem:[#allocation8 + $0x40] sm:$0xff]
    %v1309 = vld [vmem:[#allocation8 + $0x48] sm:$0xff]
    %v1310 = vld [vmem:[#allocation8 + $0x50] sm:$0xff]
    %v1311 = vld [vmem:[#allocation8 + $0x58] sm:$0xff]
    %v1312 = vld [vmem:[#allocation8 + $0x60] sm:$0xff]
    %v1313 = vld [vmem:[#allocation8 + $0x68] sm:$0xff]
    %v1314 = vld [vmem:[#allocation8 + $0x70] sm:$0xff]
    %v1315 = vld [vmem:[#allocation8 + $0x78] sm:$0xff]
    %v1316 = vld [vmem:[#allocation8 + $0x80] sm:$0xff]
    %v1317 = vld [vmem:[#allocation8 + $0x88] sm:$0xff]
    %v1318 = vld [vmem:[#allocation8 + $0x90] sm:$0xff]
    %v1319 = vld [vmem:[#allocation8 + $0x98] sm:$0xff]
    %v1320 = vld [vmem:[#allocation8 + $0xa0] sm:$0xff]
    %v1321 = vld [vmem:[#allocation8 + $0xa8] sm:$0xff]
    %v1322 = vld [vmem:[#allocation8 + $0xb0] sm:$0xff]
    %v1323 = vld [vmem:[#allocation8 + $0xb8] sm:$0xff]
    %v1324 = vld [vmem:[#allocation8 + $0xc0] sm:$0xff]
    %v1325 = vld [vmem:[#allocation8 + $0xc8] sm:$0xff]
    %v1326 = vld [vmem:[#allocation8 + $0xd0] sm:$0xff]
    %v1327 = vld [vmem:[#allocation8 + $0xd8] sm:$0xff]
    %v1328 = vld [vmem:[#allocation8 + $0xe0] sm:$0xff]
    %v1329 = vld [vmem:[#allocation8 + $0xe8] sm:$0xff]
    %v1330 = vld [vmem:[#allocation8 + $0xf0] sm:$0xff]
    %v1331 = vld [vmem:[#allocation8 + $0xf8] sm:$0xff]
    %v1332 = vld [vmem:[#allocation8 + $0x100] sm:$0xff]
    %v1333 = vld [vmem:[#allocation8 + $0x108] sm:$0xff]
    %v1334 = vld [vmem:[#allocation8 + $0x110] sm:$0xff]
    %v1335 = vld [vmem:[#allocation8 + $0x118] sm:$0xff]
    %v1336 = vld [vmem:[#allocation8 + $0x120] sm:$0xff]
    %v1337 = vld [vmem:[#allocation8 + $0x128] sm:$0xff]
    %v1338 = vld [vmem:[#allocation8 + $0x130] sm:$0xff]
    %v1339 = vld [vmem:[#allocation8 + $0x138] sm:$0xff]
    %v1340 = vld [vmem:[#allocation8 + $0x140] sm:$0xff]
    %v1341 = vld [vmem:[#allocation8 + $0x148] sm:$0xff]
    %v1342 = vld [vmem:[#allocation8 + $0x150] sm:$0xff]
    %v1343 = vld [vmem:[#allocation8 + $0x158] sm:$0xff]
    %v1344 = vld [vmem:[#allocation8 + $0x160] sm:$0xff]
    %v1345 = vld [vmem:[#allocation8 + $0x168] sm:$0xff]
    %v1346 = vld [vmem:[#allocation8 + $0x170] sm:$0xff]
    %v1347 = vld [vmem:[#allocation8 + $0x178] sm:$0xff]
    %v1348 = vlaneseq
    %v1349 = vshrl.u32 %v1348, 7
    %v1350 = vsub.s32 1, %v1349
    %v1351 = vrot.slane %v176, %v1350
    %v1352 = vlaneseq
    %v1353 = vshrl.u32 %v1352, 7
    %v1354 = vsub.s32 1, %v1353
    %v1355 = vrot.slane %v177, %v1354
    %v1404 = vunpack.c.l.b16 %v1300
    %v1405 = vunpack.c.h.b16 %v1300
    %v1406 = vunpack.c.l.b16 %v1301
    %v1407 = vunpack.c.h.b16 %v1301
    %v1408 = vunpack.c.l.b16 %v1302
    %v1409 = vunpack.c.h.b16 %v1302
    %v1410 = vunpack.c.l.b16 %v1303
    %v1411 = vunpack.c.h.b16 %v1303
    %v1412 = vunpack.c.l.b16 %v1304
    %v1413 = vunpack.c.h.b16 %v1304
    %v1414 = vunpack.c.l.b16 %v1305
    %v1415 = vunpack.c.h.b16 %v1305
    %v1416 = vunpack.c.l.b16 %v1306
    %v1417 = vunpack.c.h.b16 %v1306
    %v1418 = vunpack.c.l.b16 %v1307
    %v1419 = vunpack.c.h.b16 %v1307
    %v1420 = vunpack.c.l.b16 %v1308
    %v1421 = vunpack.c.h.b16 %v1308
    %v1422 = vunpack.c.l.b16 %v1309
    %v1423 = vunpack.c.h.b16 %v1309
    %v1424 = vunpack.c.l.b16 %v1310
    %v1425 = vunpack.c.h.b16 %v1310
    %v1426 = vunpack.c.l.b16 %v1311
    %v1427 = vunpack.c.h.b16 %v1311
    %v1428 = vunpack.c.l.b16 %v1312
    %v1429 = vunpack.c.h.b16 %v1312
    %v1430 = vunpack.c.l.b16 %v1313
    %v1431 = vunpack.c.h.b16 %v1313
    %v1432 = vunpack.c.l.b16 %v1314
    %v1433 = vunpack.c.h.b16 %v1314
    %v1434 = vunpack.c.l.b16 %v1315
    %v1435 = vunpack.c.h.b16 %v1315
    %v1436 = vunpack.c.l.b16 %v1316
    %v1437 = vunpack.c.h.b16 %v1316
    %v1438 = vunpack.c.l.b16 %v1317
    %v1439 = vunpack.c.h.b16 %v1317
    %v1440 = vunpack.c.l.b16 %v1318
    %v1441 = vunpack.c.h.b16 %v1318
    %v1442 = vunpack.c.l.b16 %v1319
    %v1443 = vunpack.c.h.b16 %v1319
    %v1444 = vunpack.c.l.b16 %v1320
    %v1445 = vunpack.c.h.b16 %v1320
    %v1446 = vunpack.c.l.b16 %v1321
    %v1447 = vunpack.c.h.b16 %v1321
    %v1448 = vunpack.c.l.b16 %v1322
    %v1449 = vunpack.c.h.b16 %v1322
    %v1450 = vunpack.c.l.b16 %v1323
    %v1451 = vunpack.c.h.b16 %v1323
    %v1452 = vunpack.c.l.b16 %v1324
    %v1453 = vunpack.c.h.b16 %v1324
    %v1454 = vunpack.c.l.b16 %v1325
    %v1455 = vunpack.c.h.b16 %v1325
    %v1456 = vunpack.c.l.b16 %v1326
    %v1457 = vunpack.c.h.b16 %v1326
    %v1458 = vunpack.c.l.b16 %v1327
    %v1459 = vunpack.c.h.b16 %v1327
    %v1460 = vunpack.c.l.b16 %v1328
    %v1461 = vunpack.c.h.b16 %v1328
    %v1462 = vunpack.c.l.b16 %v1329
    %v1463 = vunpack.c.h.b16 %v1329
    %v1464 = vunpack.c.l.b16 %v1330
    %v1465 = vunpack.c.h.b16 %v1330
    %v1466 = vunpack.c.l.b16 %v1331
    %v1467 = vunpack.c.h.b16 %v1331
    %v1468 = vunpack.c.l.b16 %v1332
    %v1469 = vunpack.c.h.b16 %v1332
    %v1470 = vunpack.c.l.b16 %v1333
    %v1471 = vunpack.c.h.b16 %v1333
    %v1472 = vunpack.c.l.b16 %v1334
    %v1473 = vunpack.c.h.b16 %v1334
    %v1474 = vunpack.c.l.b16 %v1335
    %v1475 = vunpack.c.h.b16 %v1335
    %v1476 = vunpack.c.l.b16 %v1336
    %v1477 = vunpack.c.h.b16 %v1336
    %v1478 = vunpack.c.l.b16 %v1337
    %v1479 = vunpack.c.h.b16 %v1337
    %v1480 = vunpack.c.l.b16 %v1338
    %v1481 = vunpack.c.h.b16 %v1338
    %v1482 = vunpack.c.l.b16 %v1339
    %v1483 = vunpack.c.h.b16 %v1339
    %v1484 = vunpack.c.l.b16 %v1340
    %v1485 = vunpack.c.h.b16 %v1340
    %v1486 = vunpack.c.l.b16 %v1341
    %v1487 = vunpack.c.h.b16 %v1341
    %v1488 = vunpack.c.l.b16 %v1342
    %v1489 = vunpack.c.h.b16 %v1342
    %v1490 = vunpack.c.l.b16 %v1343
    %v1491 = vunpack.c.h.b16 %v1343
    %v1492 = vunpack.c.l.b16 %v1344
    %v1493 = vunpack.c.h.b16 %v1344
    %v1494 = vunpack.c.l.b16 %v1345
    %v1495 = vunpack.c.h.b16 %v1345
    %v1496 = vunpack.c.l.b16 %v1346
    %v1497 = vunpack.c.h.b16 %v1346
    %v1498 = vunpack.c.l.b16 %v1347
    %v1499 = vunpack.c.h.b16 %v1347
    %v1500 = vpack.c.b16 %v1406, %v1404
    %v1501 = vpack.c.b16 %v1407, %v1405
    %v1502 = vpack.c.b16 %v1410, %v1408
    %v1503 = vpack.c.b16 %v1411, %v1409
    %v1504 = vpack.c.b16 %v1414, %v1412
    %v1505 = vpack.c.b16 %v1415, %v1413
    %v1506 = vpack.c.b16 %v1418, %v1416
    %v1507 = vpack.c.b16 %v1419, %v1417
    %v1508 = vpack.c.b16 %v1422, %v1420
    %v1509 = vpack.c.b16 %v1423, %v1421
    %v1510 = vpack.c.b16 %v1426, %v1424
    %v1511 = vpack.c.b16 %v1427, %v1425
    %v1512 = vpack.c.b16 %v1430, %v1428
    %v1513 = vpack.c.b16 %v1431, %v1429
    %v1514 = vpack.c.b16 %v1434, %v1432
    %v1515 = vpack.c.b16 %v1435, %v1433
    %v1516 = vpack.c.b16 %v1438, %v1436
    %v1517 = vpack.c.b16 %v1439, %v1437
    %v1518 = vpack.c.b16 %v1442, %v1440
    %v1519 = vpack.c.b16 %v1443, %v1441
    %v1520 = vpack.c.b16 %v1446, %v1444
    %v1521 = vpack.c.b16 %v1447, %v1445
    %v1522 = vpack.c.b16 %v1450, %v1448
    %v1523 = vpack.c.b16 %v1451, %v1449
    %v1524 = vpack.c.b16 %v1454, %v1452
    %v1525 = vpack.c.b16 %v1455, %v1453
    %v1526 = vpack.c.b16 %v1458, %v1456
    %v1527 = vpack.c.b16 %v1459, %v1457
    %v1528 = vpack.c.b16 %v1462, %v1460
    %v1529 = vpack.c.b16 %v1463, %v1461
    %v1530 = vpack.c.b16 %v1466, %v1464
    %v1531 = vpack.c.b16 %v1467, %v1465
    %v1532 = vpack.c.b16 %v1470, %v1468
    %v1533 = vpack.c.b16 %v1471, %v1469
    %v1534 = vpack.c.b16 %v1474, %v1472
    %v1535 = vpack.c.b16 %v1475, %v1473
    %v1536 = vpack.c.b16 %v1478, %v1476
    %v1537 = vpack.c.b16 %v1479, %v1477
    %v1538 = vpack.c.b16 %v1482, %v1480
    %v1539 = vpack.c.b16 %v1483, %v1481
    %v1540 = vpack.c.b16 %v1486, %v1484
    %v1541 = vpack.c.b16 %v1487, %v1485
    %v1542 = vpack.c.b16 %v1490, %v1488
    %v1543 = vpack.c.b16 %v1491, %v1489
    %v1544 = vpack.c.b16 %v1494, %v1492
    %v1545 = vpack.c.b16 %v1495, %v1493
    %v1546 = vpack.c.b16 %v1498, %v1496
    %v1547 = vpack.c.b16 %v1499, %v1497
    %1596 = vmatprep.subr.bf16.mxu0 %v1501
    %1597 = vmatpush1.bf16.msra.mxu0 %v1500
    %1598 = vmatprep.subr.bf16.mxu0 %v1503
    %1599 = vmatpush1.bf16.msra.mxu0 %v1502
    %1600 = vmatprep.subr.bf16.mxu0 %v1505
    %1601 = vmatpush1.bf16.msra.mxu0 %v1504
    %1602 = vmatprep.subr.bf16.mxu0 %v1507
    %1603 = vmatpush1.bf16.msra.mxu0 %v1506
    %1604 = vmatprep.subr.bf16.mxu0 %v1509
    %1605 = vmatpush1.bf16.msra.mxu0 %v1508
    %1606 = vmatprep.subr.bf16.mxu0 %v1511
    %1607 = vmatpush1.bf16.msra.mxu0 %v1510
    %1608 = vmatprep.subr.bf16.mxu0 %v1513
    %1609 = vmatpush1.bf16.msra.mxu0 %v1512
    %1610 = vmatprep.subr.bf16.mxu0 %v1515
    %1611 = vmatpush1.bf16.msra.mxu0 %v1514
    %1612 = vmatprep.subr.bf16.mxu0 %v1517
    %1613 = vmatpush1.bf16.msra.mxu0 %v1516
    %1614 = vmatprep.subr.bf16.mxu0 %v1519
    %1615 = vmatpush1.bf16.msra.mxu0 %v1518
    %1616 = vmatprep.subr.bf16.mxu0 %v1521
    %1617 = vmatpush1.bf16.msra.mxu0 %v1520
    %1618 = vmatprep.subr.bf16.mxu0 %v1523
    %1619 = vmatpush1.bf16.msra.mxu0 %v1522
    %1620 = vmatprep.subr.bf16.mxu0 %v1525
    %1621 = vmatpush1.bf16.msra.mxu0 %v1524
    %1622 = vmatprep.subr.bf16.mxu0 %v1527
    %1623 = vmatpush1.bf16.msra.mxu0 %v1526
    %1624 = vmatprep.subr.bf16.mxu0 %v1529
    %1625 = vmatpush1.bf16.msra.mxu0 %v1528
    %1626 = vmatprep.subr.bf16.mxu0 %v1531
    %1627 = vmatpush1.bf16.msra.mxu0 %v1530
    %1628 = vmatprep.mubr.bf16.mxu0 %v1298
    %1629 = vmatmul.mubr.bf16.gmra.mrb[0].mxu0 %v1297
    %v1630 = vpop.f32.mrb[0].mxu0
    %v1631 = vadd.f32 %v1351, %v1630
    %v1632 = vpop.f32.mrb[0].mxu0
    %v1633 = vadd.f32 %v1355, %v1632
    %v1634 = vpop.f32.mrb[0].mxu0
    %v1635 = vadd.f32 %v1351, %v1634
    %v1636 = vpop.f32.mrb[0].mxu0
    %v1637 = vadd.f32 %v1355, %v1636
    %1638 = vdwg.mxu0
    %1639 = vmatprep.subr.bf16.mxu0 %v1533
    %1640 = vmatpush1.bf16.msra.mxu0 %v1532
    %1641 = vmatprep.subr.bf16.mxu0 %v1535
    %1642 = vmatpush1.bf16.msra.mxu0 %v1534
    %1643 = vmatprep.subr.bf16.mxu0 %v1537
    %1644 = vmatpush1.bf16.msra.mxu0 %v1536
    %1645 = vmatprep.subr.bf16.mxu0 %v1539
    %1646 = vmatpush1.bf16.msra.mxu0 %v1538
    %1647 = vmatprep.subr.bf16.mxu0 %v1541
    %1648 = vmatpush1.bf16.msra.mxu0 %v1540
    %1649 = vmatprep.subr.bf16.mxu0 %v1543
    %1650 = vmatpush1.bf16.msra.mxu0 %v1542
    %1651 = vmatprep.subr.bf16.mxu0 %v1545
    %1652 = vmatpush1.bf16.msra.mxu0 %v1544
    %1653 = vmatprep.subr.bf16.mxu0 %v1547
    %1654 = vmatpush1.bf16.msra.mxu0 %v1546
    %1655 = vmatprep.subr.bf16.mxu0 0
    %1656 = vmatpush1.bf16.msra.mxu0 0
    %1657 = vmatprep.subr.bf16.mxu0 0
    %1658 = vmatpush1.bf16.msra.mxu0 0
    %1659 = vmatprep.subr.bf16.mxu0 0
    %1660 = vmatpush1.bf16.msra.mxu0 0
    %1661 = vmatprep.subr.bf16.mxu0 0
    %1662 = vmatpush1.bf16.msra.mxu0 0
    %1663 = vmatprep.subr.bf16.mxu0 0
    %1664 = vmatpush1.bf16.msra.mxu0 0
    %1665 = vmatprep.subr.bf16.mxu0 0
    %1666 = vmatpush1.bf16.msra.mxu0 0
    %1667 = vmatprep.subr.bf16.mxu0 0
    %1668 = vmatpush1.bf16.msra.mxu0 0
    %1669 = vmatprep.subr.bf16.mxu0 0
    %1670 = vmatpush1.bf16.msra.mxu0 0
    %1671 = vmatprep.mubr.bf16.mxu0 0
    %1672 = vmatmul.mubr.bf16.gmra.mrb[0].mxu0 %v1299
    %v1673 = vpop.f32.mrb[0].mxu0
    %v1674 = vadd.f32 %v1631, %v1673
    %v1675 = vpop.f32.mrb[0].mxu0
    %v1676 = vadd.f32 %v1633, %v1675
    %v1677 = vpop.f32.mrb[0].mxu0
    %v1678 = vadd.f32 %v1635, %v1677
    %v1679 = vpop.f32.mrb[0].mxu0
    %v1680 = vadd.f32 %v1637, %v1679
    %1681 = vdwg.mxu0
    %v1682 = vpack.c.bf16 %v1678, %v1674
    %v1683 = vpack.c.bf16 %v1680, %v1676
    %v1684 = vtanh.bf16.pop %v1682
    %v1685 = vtanh.bf16.pop %v1683
    %v1686 = vld [vmem:[#allocation10] sm:$0xf]
    %v1687 = vld [vmem:[#allocation10 + $0x4] sm:$0xf]
    %v1688 = vld [vmem:[#allocation10 + $0x8] sm:$0xf]
    %v1689 = vld [vmem:[#allocation10 + $0xc] sm:$0xf]
    %v1690 = vld [vmem:[#allocation10 + $0x10] sm:$0xf]
    %v1691 = vld [vmem:[#allocation10 + $0x14] sm:$0xf]
    %v1692 = vld [vmem:[#allocation10 + $0x18] sm:$0xf]
    %v1693 = vld [vmem:[#allocation10 + $0x1c] sm:$0xf]
    %v1694 = vld [vmem:[#allocation10 + $0x20] sm:$0xf]
    %v1695 = vld [vmem:[#allocation10 + $0x24] sm:$0xf]
    %v1696 = vld [vmem:[#allocation10 + $0x28] sm:$0xf]
    %v1697 = vld [vmem:[#allocation10 + $0x2c] sm:$0xf]
    %v1698 = vld [vmem:[#allocation10 + $0x30] sm:$0xf]
    %v1699 = vld [vmem:[#allocation10 + $0x34] sm:$0xf]
    %v1700 = vld [vmem:[#allocation10 + $0x38] sm:$0xf]
    %v1701 = vld [vmem:[#allocation10 + $0x3c] sm:$0xf]
    %v1702 = vld [vmem:[#allocation10 + $0x40] sm:$0xf]
    %v1703 = vld [vmem:[#allocation10 + $0x44] sm:$0xf]
    %v1704 = vld [vmem:[#allocation10 + $0x48] sm:$0xf]
    %v1705 = vld [vmem:[#allocation10 + $0x4c] sm:$0xf]
    %v1706 = vld [vmem:[#allocation10 + $0x50] sm:$0xf]
    %v1707 = vld [vmem:[#allocation10 + $0x54] sm:$0xf]
    %v1708 = vld [vmem:[#allocation10 + $0x58] sm:$0xf]
    %v1709 = vld [vmem:[#allocation10 + $0x5c] sm:$0xf]
    %v1710 = vld [vmem:[#allocation10 + $0x60] sm:$0xf]
    %v1711 = vld [vmem:[#allocation10 + $0x64] sm:$0xf]
    %v1712 = vld [vmem:[#allocation10 + $0x68] sm:$0xf]
    %v1713 = vld [vmem:[#allocation10 + $0x6c] sm:$0xf]
    %v1714 = vld [vmem:[#allocation10 + $0x70] sm:$0xf]
    %v1715 = vld [vmem:[#allocation10 + $0x74] sm:$0xf]
    %v1716 = vld [vmem:[#allocation10 + $0x78] sm:$0xf]
    %v1717 = vld [vmem:[#allocation10 + $0x7c] sm:$0xf]
    %v1718 = vlaneseq
    %v1719 = vshrl.u32 %v1718, 7
    %v1720 = vsub.s32 2, %v1719
    %v1721 = vrot.slane %v176, %v1720
    %v1754 = vunpack.c.l.b16 %v1686
    %v1755 = vunpack.c.l.b16 %v1687
    %v1756 = vunpack.c.l.b16 %v1688
    %v1757 = vunpack.c.l.b16 %v1689
    %v1758 = vunpack.c.l.b16 %v1690
    %v1759 = vunpack.c.l.b16 %v1691
    %v1760 = vunpack.c.l.b16 %v1692
    %v1761 = vunpack.c.l.b16 %v1693
    %v1762 = vunpack.c.l.b16 %v1694
    %v1763 = vunpack.c.l.b16 %v1695
    %v1764 = vunpack.c.l.b16 %v1696
    %v1765 = vunpack.c.l.b16 %v1697
    %v1766 = vunpack.c.l.b16 %v1698
    %v1767 = vunpack.c.l.b16 %v1699
    %v1768 = vunpack.c.l.b16 %v1700
    %v1769 = vunpack.c.l.b16 %v1701
    %v1770 = vunpack.c.l.b16 %v1702
    %v1771 = vunpack.c.l.b16 %v1703
    %v1772 = vunpack.c.l.b16 %v1704
    %v1773 = vunpack.c.l.b16 %v1705
    %v1774 = vunpack.c.l.b16 %v1706
    %v1775 = vunpack.c.l.b16 %v1707
    %v1776 = vunpack.c.l.b16 %v1708
    %v1777 = vunpack.c.l.b16 %v1709
    %v1778 = vunpack.c.l.b16 %v1710
    %v1779 = vunpack.c.l.b16 %v1711
    %v1780 = vunpack.c.l.b16 %v1712
    %v1781 = vunpack.c.l.b16 %v1713
    %v1782 = vunpack.c.l.b16 %v1714
    %v1783 = vunpack.c.l.b16 %v1715
    %v1784 = vunpack.c.l.b16 %v1716
    %v1785 = vunpack.c.l.b16 %v1717
    %v1786 = vpack.c.b16 %v1755, %v1754
    %v1787 = vpack.c.b16 %v1757, %v1756
    %v1788 = vpack.c.b16 %v1759, %v1758
    %v1789 = vpack.c.b16 %v1761, %v1760
    %v1790 = vpack.c.b16 %v1763, %v1762
    %v1791 = vpack.c.b16 %v1765, %v1764
    %v1792 = vpack.c.b16 %v1767, %v1766
    %v1793 = vpack.c.b16 %v1769, %v1768
    %v1794 = vpack.c.b16 %v1771, %v1770
    %v1795 = vpack.c.b16 %v1773, %v1772
    %v1796 = vpack.c.b16 %v1775, %v1774
    %v1797 = vpack.c.b16 %v1777, %v1776
    %v1798 = vpack.c.b16 %v1779, %v1778
    %v1799 = vpack.c.b16 %v1781, %v1780
    %v1800 = vpack.c.b16 %v1783, %v1782
    %v1801 = vpack.c.b16 %v1785, %v1784
    %1818 = vmatprep.subr.bf16.mxu0 0
    %1819 = vmatpush1.bf16.msra.mxu0 %v1786
    %1820 = vmatprep.subr.bf16.mxu0 0
    %1821 = vmatpush1.bf16.msra.mxu0 %v1787
    %1822 = vmatprep.subr.bf16.mxu0 0
    %1823 = vmatpush1.bf16.msra.mxu0 %v1788
    %1824 = vmatprep.subr.bf16.mxu0 0
    %1825 = vmatpush1.bf16.msra.mxu0 %v1789
    %1826 = vmatprep.subr.bf16.mxu0 0
    %1827 = vmatpush1.bf16.msra.mxu0 %v1790
    %1828 = vmatprep.subr.bf16.mxu0 0
    %1829 = vmatpush1.bf16.msra.mxu0 %v1791
    %1830 = vmatprep.subr.bf16.mxu0 0
    %1831 = vmatpush1.bf16.msra.mxu0 %v1792
    %1832 = vmatprep.subr.bf16.mxu0 0
    %1833 = vmatpush1.bf16.msra.mxu0 %v1793
    %1834 = vmatprep.subr.bf16.mxu0 0
    %1835 = vmatpush1.bf16.msra.mxu0 %v1794
    %1836 = vmatprep.subr.bf16.mxu0 0
    %1837 = vmatpush1.bf16.msra.mxu0 %v1795
    %1838 = vmatprep.subr.bf16.mxu0 0
    %1839 = vmatpush1.bf16.msra.mxu0 %v1796
    %1840 = vmatprep.subr.bf16.mxu0 0
    %1841 = vmatpush1.bf16.msra.mxu0 %v1797
    %1842 = vmatprep.subr.bf16.mxu0 0
    %1843 = vmatpush1.bf16.msra.mxu0 %v1798
    %1844 = vmatprep.subr.bf16.mxu0 0
    %1845 = vmatpush1.bf16.msra.mxu0 %v1799
    %1846 = vmatprep.subr.bf16.mxu0 0
    %1847 = vmatpush1.bf16.msra.mxu0 %v1800
    %1848 = vmatprep.subr.bf16.mxu0 0
    %1849 = vmatpush1.bf16.msra.mxu0 %v1801
    %1850 = vmatprep.mubr.bf16.mxu0 %v1685
    %1851 = vmatmul.mubr.bf16.gmra.mrb[0].mxu0 %v1684
    %v1852 = vpop.f32.mrb[0].mxu0
    %v1853 = vadd.f32 %v1721, %v1852
    %v1854 = vpop.f32.mrb[0].mxu0
    %v1855 = vpop.f32.mrb[0].mxu0
    %v1856 = vadd.f32 %v1721, %v1855
    %v1857 = vpop.f32.mrb[0].mxu0
    %1858 = vdwg.mxu0
    %v1859 = vpack.c.bf16 %v1856, %v1853
    %v1860 = vtanh.bf16.pop %v1859
    %v1861 = vlaneseq
    %v1862 = vand.u32 %v1861, 127
    %vm1863 = vcmp.eq.s32.totalorder %v1862, 50
    %vm1864 = vcmp.eq.s32.totalorder %v1862, 51
    %vm1865 = vmor %vm1863, %vm1864
    %vm1866 = vmpackc.low %vm1865, %vm1865
    %v1867 = vsel %vm1866, %v180, 0
    %v1868 = vsel %vm1866, %v181, 0
    %v1871 = vunpack.c.l.b16 %v1867
    %v1872 = vunpack.c.l.b16 %v1868
    %v1873 = vpack.c.b16 %v1872, %v1871
    %v1875 = vadd.bf16 %v1860, %v1873
    %v1876 = vld [vmem:[#allocation11] sm:$0xf]
    %v1877 = vld [vmem:[#allocation11 + $0x4] sm:$0xf]
    %v1878 = vld [vmem:[#allocation11 + $0x8] sm:$0xf]
    %v1879 = vld [vmem:[#allocation11 + $0xc] sm:$0xf]
    %v1880 = vld [vmem:[#allocation11 + $0x10] sm:$0xf]
    %v1881 = vld [vmem:[#allocation11 + $0x14] sm:$0xf]
    %v1882 = vld [vmem:[#allocation11 + $0x18] sm:$0xf]
    %v1883 = vld [vmem:[#allocation11 + $0x1c] sm:$0xf]
    %v1884 = vld [vmem:[#allocation11 + $0x20] sm:$0xf]
    %v1885 = vld [vmem:[#allocation11 + $0x24] sm:$0xf]
    %v1886 = vld [vmem:[#allocation11 + $0x28] sm:$0xf]
    %v1887 = vld [vmem:[#allocation11 + $0x2c] sm:$0xf]
    %v1888 = vld [vmem:[#allocation11 + $0x30] sm:$0xf]
    %v1889 = vld [vmem:[#allocation11 + $0x34] sm:$0xf]
    %v1890 = vld [vmem:[#allocation11 + $0x38] sm:$0xf]
    %v1891 = vld [vmem:[#allocation11 + $0x3c] sm:$0xf]
    %v1908 = vunpack.c.l.b16 %v1876
    %v1909 = vunpack.c.l.b16 %v1877
    %v1910 = vunpack.c.l.b16 %v1878
    %v1911 = vunpack.c.l.b16 %v1879
    %v1912 = vunpack.c.l.b16 %v1880
    %v1913 = vunpack.c.l.b16 %v1881
    %v1914 = vunpack.c.l.b16 %v1882
    %v1915 = vunpack.c.l.b16 %v1883
    %v1916 = vunpack.c.l.b16 %v1884
    %v1917 = vunpack.c.l.b16 %v1885
    %v1918 = vunpack.c.l.b16 %v1886
    %v1919 = vunpack.c.l.b16 %v1887
    %v1920 = vunpack.c.l.b16 %v1888
    %v1921 = vunpack.c.l.b16 %v1889
    %v1922 = vunpack.c.l.b16 %v1890
    %v1923 = vunpack.c.l.b16 %v1891
    %v1924 = vpack.c.b16 %v1909, %v1908
    %v1925 = vpack.c.b16 %v1911, %v1910
    %v1926 = vpack.c.b16 %v1913, %v1912
    %v1927 = vpack.c.b16 %v1915, %v1914
    %v1928 = vpack.c.b16 %v1917, %v1916
    %v1929 = vpack.c.b16 %v1919, %v1918
    %v1930 = vpack.c.b16 %v1921, %v1920
    %v1931 = vpack.c.b16 %v1923, %v1922
    %1940 = vmatprep.subr.bf16.mxu0 0
    %1941 = vmatpush1.bf16.msra.mxu0 %v1924
    %1942 = vmatprep.subr.bf16.mxu0 0
    %1943 = vmatpush1.bf16.msra.mxu0 %v1925
    %1944 = vmatprep.subr.bf16.mxu0 0
    %1945 = vmatpush1.bf16.msra.mxu0 %v1926
    %1946 = vmatprep.subr.bf16.mxu0 0
    %1947 = vmatpush1.bf16.msra.mxu0 %v1927
    %1948 = vmatprep.subr.bf16.mxu0 0
    %1949 = vmatpush1.bf16.msra.mxu0 %v1928
    %1950 = vmatprep.subr.bf16.mxu0 0
    %1951 = vmatpush1.bf16.msra.mxu0 %v1929
    %1952 = vmatprep.subr.bf16.mxu0 0
    %1953 = vmatpush1.bf16.msra.mxu0 %v1930
    %1954 = vmatprep.subr.bf16.mxu0 0
    %1955 = vmatpush1.bf16.msra.mxu0 %v1931
    %1956 = vmatprep.subr.bf16.mxu0 0
    %1957 = vmatpush1.bf16.msra.mxu0 0
    %1958 = vmatprep.subr.bf16.mxu0 0
    %1959 = vmatpush1.bf16.msra.mxu0 0
    %1960 = vmatprep.subr.bf16.mxu0 0
    %1961 = vmatpush1.bf16.msra.mxu0 0
    %1962 = vmatprep.subr.bf16.mxu0 0
    %1963 = vmatpush1.bf16.msra.mxu0 0
    %1964 = vmatprep.subr.bf16.mxu0 0
    %1965 = vmatpush1.bf16.msra.mxu0 0
    %1966 = vmatprep.subr.bf16.mxu0 0
    %1967 = vmatpush1.bf16.msra.mxu0 0
    %1968 = vmatprep.subr.bf16.mxu0 0
    %1969 = vmatpush1.bf16.msra.mxu0 0
    %1970 = vmatprep.subr.bf16.mxu0 0
    %1971 = vmatpush1.bf16.msra.mxu0 0
    %1972 = vmatprep.mubr.bf16.mxu0 0
    %1973 = vmatmul.mubr.bf16.gmra.mrb[0].mxu0 %v1875
    %v1974 = vpop.f32.mrb[0].mxu0
    %v1975 = vadd.f32 0.0, %v1974
    %v1976 = vpop.f32.mrb[0].mxu0
    %v1977 = vpop.f32.mrb[0].mxu0
    %v1978 = vadd.f32 0.0, %v1977
    %v1979 = vpop.f32.mrb[0].mxu0
    %1980 = vdwg.mxu0
    %v1981 = vpack.c.bf16 %v1978, %v1975
    %v1982 = vtanh.bf16.pop %v1981
    %v1983 = vld [vmem:[#allocation13] sm:$0xff]
    %v1984 = vld [vmem:[#allocation13 + $0x8] sm:$0xff]
    %v1985 = vld [vmem:[#allocation13 + $0x10] sm:$0xff]
    %v1986 = vld [vmem:[#allocation13 + $0x18] sm:$0xff]
    %v1987 = vld [vmem:[#allocation13 + $0x20] sm:$0xff]
    %v1988 = vld [vmem:[#allocation13 + $0x28] sm:$0xff]
    %v1989 = vld [vmem:[#allocation13 + $0x30] sm:$0xff]
    %v1990 = vld [vmem:[#allocation13 + $0x38] sm:$0xff]
    %v1991 = vld [vmem:[#allocation13 + $0x40] sm:$0xff]
    %v1992 = vld [vmem:[#allocation13 + $0x48] sm:$0xff]
    %v1993 = vld [vmem:[#allocation13 + $0x50] sm:$0xff]
    %v1994 = vld [vmem:[#allocation13 + $0x58] sm:$0xff]
    %v1995 = vld [vmem:[#allocation13 + $0x60] sm:$0xff]
    %v1996 = vld [vmem:[#allocation13 + $0x68] sm:$0xff]
    %v1997 = vld [vmem:[#allocation13 + $0x70] sm:$0xff]
    %v1998 = vld [vmem:[#allocation13 + $0x78] sm:$0xff]
    %v1999 = vlaneseq
    %v2000 = vshrl.u32 %v1999, 7
    %v2001 = vsub.s32 3, %v2000
    %v2002 = vrot.slane %v176, %v2001
    %v2003 = vlaneseq
    %v2004 = vshrl.u32 %v2003, 7
    %v2005 = vsub.s32 3, %v2004
    %v2006 = vrot.slane %v177, %v2005
    %v2023 = vunpack.c.l.b16 %v1983
    %v2024 = vunpack.c.h.b16 %v1983
    %v2025 = vunpack.c.l.b16 %v1984
    %v2026 = vunpack.c.h.b16 %v1984
    %v2027 = vunpack.c.l.b16 %v1985
    %v2028 = vunpack.c.h.b16 %v1985
    %v2029 = vunpack.c.l.b16 %v1986
    %v2030 = vunpack.c.h.b16 %v1986
    %v2031 = vunpack.c.l.b16 %v1987
    %v2032 = vunpack.c.h.b16 %v1987
    %v2033 = vunpack.c.l.b16 %v1988
    %v2034 = vunpack.c.h.b16 %v1988
    %v2035 = vunpack.c.l.b16 %v1989
    %v2036 = vunpack.c.h.b16 %v1989
    %v2037 = vunpack.c.l.b16 %v1990
    %v2038 = vunpack.c.h.b16 %v1990
    %v2039 = vunpack.c.l.b16 %v1991
    %v2040 = vunpack.c.h.b16 %v1991
    %v2041 = vunpack.c.l.b16 %v1992
    %v2042 = vunpack.c.h.b16 %v1992
    %v2043 = vunpack.c.l.b16 %v1993
    %v2044 = vunpack.c.h.b16 %v1993
    %v2045 = vunpack.c.l.b16 %v1994
    %v2046 = vunpack.c.h.b16 %v1994
    %v2047 = vunpack.c.l.b16 %v1995
    %v2048 = vunpack.c.h.b16 %v1995
    %v2049 = vunpack.c.l.b16 %v1996
    %v2050 = vunpack.c.h.b16 %v1996
    %v2051 = vunpack.c.l.b16 %v1997
    %v2052 = vunpack.c.h.b16 %v1997
    %v2053 = vunpack.c.l.b16 %v1998
    %v2054 = vunpack.c.h.b16 %v1998
    %v2055 = vpack.c.b16 %v2025, %v2023
    %v2056 = vpack.c.b16 %v2026, %v2024
    %v2057 = vpack.c.b16 %v2029, %v2027
    %v2058 = vpack.c.b16 %v2030, %v2028
    %v2059 = vpack.c.b16 %v2033, %v2031
    %v2060 = vpack.c.b16 %v2034, %v2032
    %v2061 = vpack.c.b16 %v2037, %v2035
    %v2062 = vpack.c.b16 %v2038, %v2036
    %v2063 = vpack.c.b16 %v2041, %v2039
    %v2064 = vpack.c.b16 %v2042, %v2040
    %v2065 = vpack.c.b16 %v2045, %v2043
    %v2066 = vpack.c.b16 %v2046, %v2044
    %v2067 = vpack.c.b16 %v2049, %v2047
    %v2068 = vpack.c.b16 %v2050, %v2048
    %v2069 = vpack.c.b16 %v2053, %v2051
    %v2070 = vpack.c.b16 %v2054, %v2052
    %2087 = vmatprep.subr.bf16.mxu0 %v2056
    %2088 = vmatpush1.bf16.msra.mxu0 %v2055
    %2089 = vmatprep.subr.bf16.mxu0 %v2058
    %2090 = vmatpush1.bf16.msra.mxu0 %v2057
    %2091 = vmatprep.subr.bf16.mxu0 %v2060
    %2092 = vmatpush1.bf16.msra.mxu0 %v2059
    %2093 = vmatprep.subr.bf16.mxu0 %v2062
    %2094 = vmatpush1.bf16.msra.mxu0 %v2061
    %2095 = vmatprep.subr.bf16.mxu0 %v2064
    %2096 = vmatpush1.bf16.msra.mxu0 %v2063
    %2097 = vmatprep.subr.bf16.mxu0 %v2066
    %2098 = vmatpush1.bf16.msra.mxu0 %v2065
    %2099 = vmatprep.subr.bf16.mxu0 %v2068
    %2100 = vmatpush1.bf16.msra.mxu0 %v2067
    %2101 = vmatprep.subr.bf16.mxu0 %v2070
    %2102 = vmatpush1.bf16.msra.mxu0 %v2069
    %2103 = vmatprep.subr.bf16.mxu0 0
    %2104 = vmatpush1.bf16.msra.mxu0 0
    %2105 = vmatprep.subr.bf16.mxu0 0
    %2106 = vmatpush1.bf16.msra.mxu0 0
    %2107 = vmatprep.subr.bf16.mxu0 0
    %2108 = vmatpush1.bf16.msra.mxu0 0
    %2109 = vmatprep.subr.bf16.mxu0 0
    %2110 = vmatpush1.bf16.msra.mxu0 0
    %2111 = vmatprep.subr.bf16.mxu0 0
    %2112 = vmatpush1.bf16.msra.mxu0 0
    %2113 = vmatprep.subr.bf16.mxu0 0
    %2114 = vmatpush1.bf16.msra.mxu0 0
    %2115 = vmatprep.subr.bf16.mxu0 0
    %2116 = vmatpush1.bf16.msra.mxu0 0
    %2117 = vmatprep.subr.bf16.mxu0 0
    %2118 = vmatpush1.bf16.msra.mxu0 0
    %2119 = vmatprep.mubr.bf16.mxu0 0
    %2120 = vmatmul.mubr.bf16.gmra.mrb[0].mxu0 %v1982
    %v2121 = vpop.f32.mrb[0].mxu0
    %v2122 = vadd.f32 %v2002, %v2121
    %v2123 = vpop.f32.mrb[0].mxu0
    %v2124 = vadd.f32 %v2006, %v2123
    %v2125 = vpop.f32.mrb[0].mxu0
    %v2126 = vadd.f32 %v2002, %v2125
    %v2127 = vpop.f32.mrb[0].mxu0
    %v2128 = vadd.f32 %v2006, %v2127
    %2129 = vdwg.mxu0
    %v2130 = vpack.c.bf16 %v2126, %v2122
    %v2131 = vpack.c.bf16 %v2128, %v2124
    %v2132 = vtanh.bf16.pop %v2130
    %v2133 = vtanh.bf16.pop %v2131
    %v2134 = vld [vmem:[#allocation14] sm:$0xff]
    %v2135 = vld [vmem:[#allocation14 + $0x8] sm:$0xff]
    %v2136 = vld [vmem:[#allocation14 + $0x10] sm:$0xff]
    %v2137 = vld [vmem:[#allocation14 + $0x18] sm:$0xff]
    %v2138 = vld [vmem:[#allocation14 + $0x20] sm:$0xff]
    %v2139 = vld [vmem:[#allocation14 + $0x28] sm:$0xff]
    %v2140 = vld [vmem:[#allocation14 + $0x30] sm:$0xff]
    %v2141 = vld [vmem:[#allocation14 + $0x38] sm:$0xff]
    %v2142 = vld [vmem:[#allocation14 + $0x40] sm:$0xff]
    %v2143 = vld [vmem:[#allocation14 + $0x48] sm:$0xff]
    %v2144 = vld [vmem:[#allocation14 + $0x50] sm:$0xff]
    %v2145 = vld [vmem:[#allocation14 + $0x58] sm:$0xff]
    %v2146 = vld [vmem:[#allocation14 + $0x60] sm:$0xff]
    %v2147 = vld [vmem:[#allocation14 + $0x68] sm:$0xff]
    %v2148 = vld [vmem:[#allocation14 + $0x70] sm:$0xff]
    %v2149 = vld [vmem:[#allocation14 + $0x78] sm:$0xff]
    %v2150 = vld [vmem:[#allocation14 + $0x80] sm:$0xff]
    %v2151 = vld [vmem:[#allocation14 + $0x88] sm:$0xff]
    %v2152 = vld [vmem:[#allocation14 + $0x90] sm:$0xff]
    %v2153 = vld [vmem:[#allocation14 + $0x98] sm:$0xff]
    %v2154 = vld [vmem:[#allocation14 + $0xa0] sm:$0xff]
    %v2155 = vld [vmem:[#allocation14 + $0xa8] sm:$0xff]
    %v2156 = vld [vmem:[#allocation14 + $0xb0] sm:$0xff]
    %v2157 = vld [vmem:[#allocation14 + $0xb8] sm:$0xff]
    %v2158 = vld [vmem:[#allocation14 + $0xc0] sm:$0xff]
    %v2159 = vld [vmem:[#allocation14 + $0xc8] sm:$0xff]
    %v2160 = vld [vmem:[#allocation14 + $0xd0] sm:$0xff]
    %v2161 = vld [vmem:[#allocation14 + $0xd8] sm:$0xff]
    %v2162 = vld [vmem:[#allocation14 + $0xe0] sm:$0xff]
    %v2163 = vld [vmem:[#allocation14 + $0xe8] sm:$0xff]
    %v2164 = vld [vmem:[#allocation14 + $0xf0] sm:$0xff]
    %v2165 = vld [vmem:[#allocation14 + $0xf8] sm:$0xff]
    %v2166 = vld [vmem:[#allocation14 + $0x100] sm:$0xff]
    %v2167 = vld [vmem:[#allocation14 + $0x108] sm:$0xff]
    %v2168 = vld [vmem:[#allocation14 + $0x110] sm:$0xff]
    %v2169 = vld [vmem:[#allocation14 + $0x118] sm:$0xff]
    %v2170 = vld [vmem:[#allocation14 + $0x120] sm:$0xff]
    %v2171 = vld [vmem:[#allocation14 + $0x128] sm:$0xff]
    %v2172 = vld [vmem:[#allocation14 + $0x130] sm:$0xff]
    %v2173 = vld [vmem:[#allocation14 + $0x138] sm:$0xff]
    %v2174 = vld [vmem:[#allocation14 + $0x140] sm:$0xff]
    %v2175 = vld [vmem:[#allocation14 + $0x148] sm:$0xff]
    %v2176 = vld [vmem:[#allocation14 + $0x150] sm:$0xff]
    %v2177 = vld [vmem:[#allocation14 + $0x158] sm:$0xff]
    %v2178 = vld [vmem:[#allocation14 + $0x160] sm:$0xff]
    %v2179 = vld [vmem:[#allocation14 + $0x168] sm:$0xff]
    %v2180 = vld [vmem:[#allocation14 + $0x170] sm:$0xff]
    %v2181 = vld [vmem:[#allocation14 + $0x178] sm:$0xff]
    %v2182 = vld [vmem:[#allocation14 + $0x180] sm:$0xff]
    %v2183 = vld [vmem:[#allocation14 + $0x188] sm:$0xff]
    %v2184 = vld [vmem:[#allocation14 + $0x190] sm:$0xff]
    %v2185 = vld [vmem:[#allocation14 + $0x198] sm:$0xff]
    %v2186 = vld [vmem:[#allocation14 + $0x1a0] sm:$0xff]
    %v2187 = vld [vmem:[#allocation14 + $0x1a8] sm:$0xff]
    %v2188 = vld [vmem:[#allocation14 + $0x1b0] sm:$0xff]
    %v2189 = vld [vmem:[#allocation14 + $0x1b8] sm:$0xff]
    %v2190 = vld [vmem:[#allocation14 + $0x1c0] sm:$0xff]
    %v2191 = vld [vmem:[#allocation14 + $0x1c8] sm:$0xff]
    %v2192 = vld [vmem:[#allocation14 + $0x1d0] sm:$0xff]
    %v2193 = vld [vmem:[#allocation14 + $0x1d8] sm:$0xff]
    %v2194 = vld [vmem:[#allocation14 + $0x1e0] sm:$0xff]
    %v2195 = vld [vmem:[#allocation14 + $0x1e8] sm:$0xff]
    %v2196 = vld [vmem:[#allocation14 + $0x1f0] sm:$0xff]
    %v2197 = vld [vmem:[#allocation14 + $0x1f8] sm:$0xff]
    %v2198 = vlaneseq
    %v2199 = vshrl.u32 %v2198, 7
    %v2200 = vsub.s32 4, %v2199
    %v2201 = vrot.slane %v176, %v2200
    %v2202 = vlaneseq
    %v2203 = vshrl.u32 %v2202, 7
    %v2204 = vsub.s32 4, %v2203
    %v2205 = vrot.slane %v177, %v2204
    %v2206 = vlaneseq
    %v2207 = vshrl.u32 %v2206, 7
    %v2208 = vsub.s32 4, %v2207
    %v2209 = vrot.slane %v178, %v2208
    %v2210 = vlaneseq
    %v2211 = vshrl.u32 %v2210, 7
    %v2212 = vsub.s32 4, %v2211
    %v2213 = vrot.slane %v179, %v2212
    %v2278 = vunpack.c.l.b16 %v2134
    %v2279 = vunpack.c.h.b16 %v2134
    %v2280 = vunpack.c.l.b16 %v2135
    %v2281 = vunpack.c.h.b16 %v2135
    %v2282 = vunpack.c.l.b16 %v2136
    %v2283 = vunpack.c.h.b16 %v2136
    %v2284 = vunpack.c.l.b16 %v2137
    %v2285 = vunpack.c.h.b16 %v2137
    %v2286 = vunpack.c.l.b16 %v2138
    %v2287 = vunpack.c.h.b16 %v2138
    %v2288 = vunpack.c.l.b16 %v2139
    %v2289 = vunpack.c.h.b16 %v2139
    %v2290 = vunpack.c.l.b16 %v2140
    %v2291 = vunpack.c.h.b16 %v2140
    %v2292 = vunpack.c.l.b16 %v2141
    %v2293 = vunpack.c.h.b16 %v2141
    %v2294 = vunpack.c.l.b16 %v2142
    %v2295 = vunpack.c.h.b16 %v2142
    %v2296 = vunpack.c.l.b16 %v2143
    %v2297 = vunpack.c.h.b16 %v2143
    %v2298 = vunpack.c.l.b16 %v2144
    %v2299 = vunpack.c.h.b16 %v2144
    %v2300 = vunpack.c.l.b16 %v2145
    %v2301 = vunpack.c.h.b16 %v2145
    %v2302 = vunpack.c.l.b16 %v2146
    %v2303 = vunpack.c.h.b16 %v2146
    %v2304 = vunpack.c.l.b16 %v2147
    %v2305 = vunpack.c.h.b16 %v2147
    %v2306 = vunpack.c.l.b16 %v2148
    %v2307 = vunpack.c.h.b16 %v2148
    %v2308 = vunpack.c.l.b16 %v2149
    %v2309 = vunpack.c.h.b16 %v2149
    %v2310 = vunpack.c.l.b16 %v2150
    %v2311 = vunpack.c.h.b16 %v2150
    %v2312 = vunpack.c.l.b16 %v2151
    %v2313 = vunpack.c.h.b16 %v2151
    %v2314 = vunpack.c.l.b16 %v2152
    %v2315 = vunpack.c.h.b16 %v2152
    %v2316 = vunpack.c.l.b16 %v2153
    %v2317 = vunpack.c.h.b16 %v2153
    %v2318 = vunpack.c.l.b16 %v2154
    %v2319 = vunpack.c.h.b16 %v2154
    %v2320 = vunpack.c.l.b16 %v2155
    %v2321 = vunpack.c.h.b16 %v2155
    %v2322 = vunpack.c.l.b16 %v2156
    %v2323 = vunpack.c.h.b16 %v2156
    %v2324 = vunpack.c.l.b16 %v2157
    %v2325 = vunpack.c.h.b16 %v2157
    %v2326 = vunpack.c.l.b16 %v2158
    %v2327 = vunpack.c.h.b16 %v2158
    %v2328 = vunpack.c.l.b16 %v2159
    %v2329 = vunpack.c.h.b16 %v2159
    %v2330 = vunpack.c.l.b16 %v2160
    %v2331 = vunpack.c.h.b16 %v2160
    %v2332 = vunpack.c.l.b16 %v2161
    %v2333 = vunpack.c.h.b16 %v2161
    %v2334 = vunpack.c.l.b16 %v2162
    %v2335 = vunpack.c.h.b16 %v2162
    %v2336 = vunpack.c.l.b16 %v2163
    %v2337 = vunpack.c.h.b16 %v2163
    %v2338 = vunpack.c.l.b16 %v2164
    %v2339 = vunpack.c.h.b16 %v2164
    %v2340 = vunpack.c.l.b16 %v2165
    %v2341 = vunpack.c.h.b16 %v2165
    %v2342 = vunpack.c.l.b16 %v2166
    %v2343 = vunpack.c.h.b16 %v2166
    %v2344 = vunpack.c.l.b16 %v2167
    %v2345 = vunpack.c.h.b16 %v2167
    %v2346 = vunpack.c.l.b16 %v2168
    %v2347 = vunpack.c.h.b16 %v2168
    %v2348 = vunpack.c.l.b16 %v2169
    %v2349 = vunpack.c.h.b16 %v2169
    %v2350 = vunpack.c.l.b16 %v2170
    %v2351 = vunpack.c.h.b16 %v2170
    %v2352 = vunpack.c.l.b16 %v2171
    %v2353 = vunpack.c.h.b16 %v2171
    %v2354 = vunpack.c.l.b16 %v2172
    %v2355 = vunpack.c.h.b16 %v2172
    %v2356 = vunpack.c.l.b16 %v2173
    %v2357 = vunpack.c.h.b16 %v2173
    %v2358 = vunpack.c.l.b16 %v2174
    %v2359 = vunpack.c.h.b16 %v2174
    %v2360 = vunpack.c.l.b16 %v2175
    %v2361 = vunpack.c.h.b16 %v2175
    %v2362 = vunpack.c.l.b16 %v2176
    %v2363 = vunpack.c.h.b16 %v2176
    %v2364 = vunpack.c.l.b16 %v2177
    %v2365 = vunpack.c.h.b16 %v2177
    %v2366 = vunpack.c.l.b16 %v2178
    %v2367 = vunpack.c.h.b16 %v2178
    %v2368 = vunpack.c.l.b16 %v2179
    %v2369 = vunpack.c.h.b16 %v2179
    %v2370 = vunpack.c.l.b16 %v2180
    %v2371 = vunpack.c.h.b16 %v2180
    %v2372 = vunpack.c.l.b16 %v2181
    %v2373 = vunpack.c.h.b16 %v2181
    %v2374 = vunpack.c.l.b16 %v2182
    %v2375 = vunpack.c.h.b16 %v2182
    %v2376 = vunpack.c.l.b16 %v2183
    %v2377 = vunpack.c.h.b16 %v2183
    %v2378 = vunpack.c.l.b16 %v2184
    %v2379 = vunpack.c.h.b16 %v2184
    %v2380 = vunpack.c.l.b16 %v2185
    %v2381 = vunpack.c.h.b16 %v2185
    %v2382 = vunpack.c.l.b16 %v2186
    %v2383 = vunpack.c.h.b16 %v2186
    %v2384 = vunpack.c.l.b16 %v2187
    %v2385 = vunpack.c.h.b16 %v2187
    %v2386 = vunpack.c.l.b16 %v2188
    %v2387 = vunpack.c.h.b16 %v2188
    %v2388 = vunpack.c.l.b16 %v2189
    %v2389 = vunpack.c.h.b16 %v2189
    %v2390 = vunpack.c.l.b16 %v2190
    %v2391 = vunpack.c.h.b16 %v2190
    %v2392 = vunpack.c.l.b16 %v2191
    %v2393 = vunpack.c.h.b16 %v2191
    %v2394 = vunpack.c.l.b16 %v2192
    %v2395 = vunpack.c.h.b16 %v2192
    %v2396 = vunpack.c.l.b16 %v2193
    %v2397 = vunpack.c.h.b16 %v2193
    %v2398 = vunpack.c.l.b16 %v2194
    %v2399 = vunpack.c.h.b16 %v2194
    %v2400 = vunpack.c.l.b16 %v2195
    %v2401 = vunpack.c.h.b16 %v2195
    %v2402 = vunpack.c.l.b16 %v2196
    %v2403 = vunpack.c.h.b16 %v2196
    %v2404 = vunpack.c.l.b16 %v2197
    %v2405 = vunpack.c.h.b16 %v2197
    %v2406 = vpack.c.b16 %v2282, %v2278
    %v2407 = vpack.c.b16 %v2283, %v2279
    %v2408 = vpack.c.b16 %v2284, %v2280
    %v2409 = vpack.c.b16 %v2285, %v2281
    %v2410 = vpack.c.b16 %v2290, %v2286
    %v2411 = vpack.c.b16 %v2291, %v2287
    %v2412 = vpack.c.b16 %v2292, %v2288
    %v2413 = vpack.c.b16 %v2293, %v2289
    %v2414 = vpack.c.b16 %v2298, %v2294
    %v2415 = vpack.c.b16 %v2299, %v2295
    %v2416 = vpack.c.b16 %v2300, %v2296
    %v2417 = vpack.c.b16 %v2301, %v2297
    %v2418 = vpack.c.b16 %v2306, %v2302
    %v2419 = vpack.c.b16 %v2307, %v2303
    %v2420 = vpack.c.b16 %v2308, %v2304
    %v2421 = vpack.c.b16 %v2309, %v2305
    %v2422 = vpack.c.b16 %v2314, %v2310
    %v2423 = vpack.c.b16 %v2315, %v2311
    %v2424 = vpack.c.b16 %v2316, %v2312
    %v2425 = vpack.c.b16 %v2317, %v2313
    %v2426 = vpack.c.b16 %v2322, %v2318
    %v2427 = vpack.c.b16 %v2323, %v2319
    %v2428 = vpack.c.b16 %v2324, %v2320
    %v2429 = vpack.c.b16 %v2325, %v2321
    %v2430 = vpack.c.b16 %v2330, %v2326
    %v2431 = vpack.c.b16 %v2331, %v2327
    %v2432 = vpack.c.b16 %v2332, %v2328
    %v2433 = vpack.c.b16 %v2333, %v2329
    %v2434 = vpack.c.b16 %v2338, %v2334
    %v2435 = vpack.c.b16 %v2339, %v2335
    %v2436 = vpack.c.b16 %v2340, %v2336
    %v2437 = vpack.c.b16 %v2341, %v2337
    %v2438 = vpack.c.b16 %v2346, %v2342
    %v2439 = vpack.c.b16 %v2347, %v2343
    %v2440 = vpack.c.b16 %v2348, %v2344
    %v2441 = vpack.c.b16 %v2349, %v2345
    %v2442 = vpack.c.b16 %v2354, %v2350
    %v2443 = vpack.c.b16 %v2355, %v2351
    %v2444 = vpack.c.b16 %v2356, %v2352
    %v2445 = vpack.c.b16 %v2357, %v2353
    %v2446 = vpack.c.b16 %v2362, %v2358
    %v2447 = vpack.c.b16 %v2363, %v2359
    %v2448 = vpack.c.b16 %v2364, %v2360
    %v2449 = vpack.c.b16 %v2365, %v2361
    %v2450 = vpack.c.b16 %v2370, %v2366
    %v2451 = vpack.c.b16 %v2371, %v2367
    %v2452 = vpack.c.b16 %v2372, %v2368
    %v2453 = vpack.c.b16 %v2373, %v2369
    %v2454 = vpack.c.b16 %v2378, %v2374
    %v2455 = vpack.c.b16 %v2379, %v2375
    %v2456 = vpack.c.b16 %v2380, %v2376
    %v2457 = vpack.c.b16 %v2381, %v2377
    %v2458 = vpack.c.b16 %v2386, %v2382
    %v2459 = vpack.c.b16 %v2387, %v2383
    %v2460 = vpack.c.b16 %v2388, %v2384
    %v2461 = vpack.c.b16 %v2389, %v2385
    %v2462 = vpack.c.b16 %v2394, %v2390
    %v2463 = vpack.c.b16 %v2395, %v2391
    %v2464 = vpack.c.b16 %v2396, %v2392
    %v2465 = vpack.c.b16 %v2397, %v2393
    %v2466 = vpack.c.b16 %v2402, %v2398
    %v2467 = vpack.c.b16 %v2403, %v2399
    %v2468 = vpack.c.b16 %v2404, %v2400
    %v2469 = vpack.c.b16 %v2405, %v2401
    %2534 = vmatprep.subr.bf16.mxu0 %v2407
    %2535 = vmatpush1.bf16.msra.mxu0 %v2406
    %2536 = vmatprep.subr.bf16.mxu0 %v2411
    %2537 = vmatpush1.bf16.msra.mxu0 %v2410
    %2538 = vmatprep.subr.bf16.mxu0 %v2415
    %2539 = vmatpush1.bf16.msra.mxu0 %v2414
    %2540 = vmatprep.subr.bf16.mxu0 %v2419
    %2541 = vmatpush1.bf16.msra.mxu0 %v2418
    %2542 = vmatprep.subr.bf16.mxu0 %v2423
    %2543 = vmatpush1.bf16.msra.mxu0 %v2422
    %2544 = vmatprep.subr.bf16.mxu0 %v2427
    %2545 = vmatpush1.bf16.msra.mxu0 %v2426
    %2546 = vmatprep.subr.bf16.mxu0 %v2431
    %2547 = vmatpush1.bf16.msra.mxu0 %v2430
    %2548 = vmatprep.subr.bf16.mxu0 %v2435
    %2549 = vmatpush1.bf16.msra.mxu0 %v2434
    %2550 = vmatprep.subr.bf16.mxu0 %v2439
    %2551 = vmatpush1.bf16.msra.mxu0 %v2438
    %2552 = vmatprep.subr.bf16.mxu0 %v2443
    %2553 = vmatpush1.bf16.msra.mxu0 %v2442
    %2554 = vmatprep.subr.bf16.mxu0 %v2447
    %2555 = vmatpush1.bf16.msra.mxu0 %v2446
    %2556 = vmatprep.subr.bf16.mxu0 %v2451
    %2557 = vmatpush1.bf16.msra.mxu0 %v2450
    %2558 = vmatprep.subr.bf16.mxu0 %v2455
    %2559 = vmatpush1.bf16.msra.mxu0 %v2454
    %2560 = vmatprep.subr.bf16.mxu0 %v2459
    %2561 = vmatpush1.bf16.msra.mxu0 %v2458
    %2562 = vmatprep.subr.bf16.mxu0 %v2463
    %2563 = vmatpush1.bf16.msra.mxu0 %v2462
    %2564 = vmatprep.subr.bf16.mxu0 %v2467
    %2565 = vmatpush1.bf16.msra.mxu0 %v2466
    %2566 = vmatprep.mubr.bf16.mxu0 %v2133
    %2567 = vmatmul.mubr.bf16.gmra.mrb[0].mxu0 %v2132
    %v2568 = vpop.f32.mrb[0].mxu0
    %v2569 = vadd.f32 %v2201, %v2568
    %v2570 = vpop.f32.mrb[0].mxu0
    %v2571 = vadd.f32 %v2205, %v2570
    %v2572 = vpop.f32.mrb[0].mxu0
    %v2573 = vadd.f32 %v2201, %v2572
    %v2574 = vpop.f32.mrb[0].mxu0
    %v2575 = vadd.f32 %v2205, %v2574
    %2576 = vdwg.mxu0
    %2577 = vmatprep.subr.bf16.mxu0 %v2409
    %2578 = vmatpush1.bf16.msra.mxu0 %v2408
    %2579 = vmatprep.subr.bf16.mxu0 %v2413
    %2580 = vmatpush1.bf16.msra.mxu0 %v2412
    %2581 = vmatprep.subr.bf16.mxu0 %v2417
    %2582 = vmatpush1.bf16.msra.mxu0 %v2416
    %2583 = vmatprep.subr.bf16.mxu0 %v2421
    %2584 = vmatpush1.bf16.msra.mxu0 %v2420
    %2585 = vmatprep.subr.bf16.mxu0 %v2425
    %2586 = vmatpush1.bf16.msra.mxu0 %v2424
    %2587 = vmatprep.subr.bf16.mxu0 %v2429
    %2588 = vmatpush1.bf16.msra.mxu0 %v2428
    %2589 = vmatprep.subr.bf16.mxu0 %v2433
    %2590 = vmatpush1.bf16.msra.mxu0 %v2432
    %2591 = vmatprep.subr.bf16.mxu0 %v2437
    %2592 = vmatpush1.bf16.msra.mxu0 %v2436
    %2593 = vmatprep.subr.bf16.mxu0 %v2441
    %2594 = vmatpush1.bf16.msra.mxu0 %v2440
    %2595 = vmatprep.subr.bf16.mxu0 %v2445
    %2596 = vmatpush1.bf16.msra.mxu0 %v2444
    %2597 = vmatprep.subr.bf16.mxu0 %v2449
    %2598 = vmatpush1.bf16.msra.mxu0 %v2448
    %2599 = vmatprep.subr.bf16.mxu0 %v2453
    %2600 = vmatpush1.bf16.msra.mxu0 %v2452
    %2601 = vmatprep.subr.bf16.mxu0 %v2457
    %2602 = vmatpush1.bf16.msra.mxu0 %v2456
    %2603 = vmatprep.subr.bf16.mxu0 %v2461
    %2604 = vmatpush1.bf16.msra.mxu0 %v2460
    %2605 = vmatprep.subr.bf16.mxu0 %v2465
    %2606 = vmatpush1.bf16.msra.mxu0 %v2464
    %2607 = vmatprep.subr.bf16.mxu0 %v2469
    %2608 = vmatpush1.bf16.msra.mxu0 %v2468
    %2609 = vmatprep.mubr.bf16.mxu0 %v2133
    %2610 = vmatmul.mubr.bf16.gmra.mrb[0].mxu0 %v2132
    %v2611 = vpop.f32.mrb[0].mxu0
    %v2612 = vadd.f32 %v2209, %v2611
    %v2613 = vpop.f32.mrb[0].mxu0
    %v2614 = vadd.f32 %v2213, %v2613
    %v2615 = vpop.f32.mrb[0].mxu0
    %v2616 = vadd.f32 %v2209, %v2615
    %v2617 = vpop.f32.mrb[0].mxu0
    %v2618 = vadd.f32 %v2213, %v2617
    %2619 = vdwg.mxu0
    %v2620 = vpack.c.bf16 %v2573, %v2569
    %v2621 = vpack.c.bf16 %v2575, %v2571
    %v2622 = vpack.c.bf16 %v2616, %v2612
    %v2623 = vpack.c.bf16 %v2618, %v2614
    %v2624 = vtanh.bf16.pop %v2620
    %v2625 = vtanh.bf16.pop %v2621
    %v2626 = vtanh.bf16.pop %v2622
    %v2627 = vtanh.bf16.pop %v2623
    %v2628 = vld [vmem:[#allocation16] sm:$0xf]
    %v2629 = vld [vmem:[#allocation16 + $0x4] sm:$0xf]
    %v2630 = vld [vmem:[#allocation16 + $0x8] sm:$0xf]
    %v2631 = vld [vmem:[#allocation16 + $0xc] sm:$0xf]
    %v2632 = vld [vmem:[#allocation16 + $0x10] sm:$0xf]
    %v2633 = vld [vmem:[#allocation16 + $0x14] sm:$0xf]
    %v2634 = vld [vmem:[#allocation16 + $0x18] sm:$0xf]
    %v2635 = vld [vmem:[#allocation16 + $0x1c] sm:$0xf]
    %v2636 = vld [vmem:[#allocation16 + $0x20] sm:$0xf]
    %v2637 = vld [vmem:[#allocation16 + $0x24] sm:$0xf]
    %v2638 = vld [vmem:[#allocation16 + $0x28] sm:$0xf]
    %v2639 = vld [vmem:[#allocation16 + $0x2c] sm:$0xf]
    %v2640 = vld [vmem:[#allocation16 + $0x30] sm:$0xf]
    %v2641 = vld [vmem:[#allocation16 + $0x34] sm:$0xf]
    %v2642 = vld [vmem:[#allocation16 + $0x38] sm:$0xf]
    %v2643 = vld [vmem:[#allocation16 + $0x3c] sm:$0xf]
    %v2644 = vld [vmem:[#allocation16 + $0x40] sm:$0xf]
    %v2645 = vld [vmem:[#allocation16 + $0x44] sm:$0xf]
    %v2646 = vld [vmem:[#allocation16 + $0x48] sm:$0xf]
    %v2647 = vld [vmem:[#allocation16 + $0x4c] sm:$0xf]
    %v2648 = vld [vmem:[#allocation16 + $0x50] sm:$0xf]
    %v2649 = vld [vmem:[#allocation16 + $0x54] sm:$0xf]
    %v2650 = vld [vmem:[#allocation16 + $0x58] sm:$0xf]
    %v2651 = vld [vmem:[#allocation16 + $0x5c] sm:$0xf]
    %v2652 = vld [vmem:[#allocation16 + $0x60] sm:$0xf]
    %v2653 = vld [vmem:[#allocation16 + $0x64] sm:$0xf]
    %v2654 = vld [vmem:[#allocation16 + $0x68] sm:$0xf]
    %v2655 = vld [vmem:[#allocation16 + $0x6c] sm:$0xf]
    %v2656 = vld [vmem:[#allocation16 + $0x70] sm:$0xf]
    %v2657 = vld [vmem:[#allocation16 + $0x74] sm:$0xf]
    %v2658 = vld [vmem:[#allocation16 + $0x78] sm:$0xf]
    %v2659 = vld [vmem:[#allocation16 + $0x7c] sm:$0xf]
    %v2660 = vld [vmem:[#allocation16 + $0x80] sm:$0xf]
    %v2661 = vld [vmem:[#allocation16 + $0x84] sm:$0xf]
    %v2662 = vld [vmem:[#allocation16 + $0x88] sm:$0xf]
    %v2663 = vld [vmem:[#allocation16 + $0x8c] sm:$0xf]
    %v2664 = vld [vmem:[#allocation16 + $0x90] sm:$0xf]
    %v2665 = vld [vmem:[#allocation16 + $0x94] sm:$0xf]
    %v2666 = vld [vmem:[#allocation16 + $0x98] sm:$0xf]
    %v2667 = vld [vmem:[#allocation16 + $0x9c] sm:$0xf]
    %v2668 = vld [vmem:[#allocation16 + $0xa0] sm:$0xf]
    %v2669 = vld [vmem:[#allocation16 + $0xa4] sm:$0xf]
    %v2670 = vld [vmem:[#allocation16 + $0xa8] sm:$0xf]
    %v2671 = vld [vmem:[#allocation16 + $0xac] sm:$0xf]
    %v2672 = vld [vmem:[#allocation16 + $0xb0] sm:$0xf]
    %v2673 = vld [vmem:[#allocation16 + $0xb4] sm:$0xf]
    %v2674 = vld [vmem:[#allocation16 + $0xb8] sm:$0xf]
    %v2675 = vld [vmem:[#allocation16 + $0xbc] sm:$0xf]
    %v2676 = vld [vmem:[#allocation16 + $0xc0] sm:$0xf]
    %v2677 = vld [vmem:[#allocation16 + $0xc4] sm:$0xf]
    %v2678 = vld [vmem:[#allocation16 + $0xc8] sm:$0xf]
    %v2679 = vld [vmem:[#allocation16 + $0xcc] sm:$0xf]
    %v2680 = vld [vmem:[#allocation16 + $0xd0] sm:$0xf]
    %v2681 = vld [vmem:[#allocation16 + $0xd4] sm:$0xf]
    %v2682 = vld [vmem:[#allocation16 + $0xd8] sm:$0xf]
    %v2683 = vld [vmem:[#allocation16 + $0xdc] sm:$0xf]
    %v2684 = vld [vmem:[#allocation16 + $0xe0] sm:$0xf]
    %v2685 = vld [vmem:[#allocation16 + $0xe4] sm:$0xf]
    %v2686 = vld [vmem:[#allocation16 + $0xe8] sm:$0xf]
    %v2687 = vld [vmem:[#allocation16 + $0xec] sm:$0xf]
    %v2688 = vld [vmem:[#allocation16 + $0xf0] sm:$0xf]
    %v2689 = vld [vmem:[#allocation16 + $0xf4] sm:$0xf]
    %v2690 = vld [vmem:[#allocation16 + $0xf8] sm:$0xf]
    %v2691 = vld [vmem:[#allocation16 + $0xfc] sm:$0xf]
    %v2692 = vlaneseq
    %v2693 = vshrl.u32 %v2692, 7
    %v2694 = vsub.s32 5, %v2693
    %v2695 = vrot.slane %v176, %v2694
    %v2760 = vunpack.c.l.b16 %v2628
    %v2761 = vunpack.c.l.b16 %v2629
    %v2762 = vunpack.c.l.b16 %v2630
    %v2763 = vunpack.c.l.b16 %v2631
    %v2764 = vunpack.c.l.b16 %v2632
    %v2765 = vunpack.c.l.b16 %v2633
    %v2766 = vunpack.c.l.b16 %v2634
    %v2767 = vunpack.c.l.b16 %v2635
    %v2768 = vunpack.c.l.b16 %v2636
    %v2769 = vunpack.c.l.b16 %v2637
    %v2770 = vunpack.c.l.b16 %v2638
    %v2771 = vunpack.c.l.b16 %v2639
    %v2772 = vunpack.c.l.b16 %v2640
    %v2773 = vunpack.c.l.b16 %v2641
    %v2774 = vunpack.c.l.b16 %v2642
    %v2775 = vunpack.c.l.b16 %v2643
    %v2776 = vunpack.c.l.b16 %v2644
    %v2777 = vunpack.c.l.b16 %v2645
    %v2778 = vunpack.c.l.b16 %v2646
    %v2779 = vunpack.c.l.b16 %v2647
    %v2780 = vunpack.c.l.b16 %v2648
    %v2781 = vunpack.c.l.b16 %v2649
    %v2782 = vunpack.c.l.b16 %v2650
    %v2783 = vunpack.c.l.b16 %v2651
    %v2784 = vunpack.c.l.b16 %v2652
    %v2785 = vunpack.c.l.b16 %v2653
    %v2786 = vunpack.c.l.b16 %v2654
    %v2787 = vunpack.c.l.b16 %v2655
    %v2788 = vunpack.c.l.b16 %v2656
    %v2789 = vunpack.c.l.b16 %v2657
    %v2790 = vunpack.c.l.b16 %v2658
    %v2791 = vunpack.c.l.b16 %v2659
    %v2792 = vunpack.c.l.b16 %v2660
    %v2793 = vunpack.c.l.b16 %v2661
    %v2794 = vunpack.c.l.b16 %v2662
    %v2795 = vunpack.c.l.b16 %v2663
    %v2796 = vunpack.c.l.b16 %v2664
    %v2797 = vunpack.c.l.b16 %v2665
    %v2798 = vunpack.c.l.b16 %v2666
    %v2799 = vunpack.c.l.b16 %v2667
    %v2800 = vunpack.c.l.b16 %v2668
    %v2801 = vunpack.c.l.b16 %v2669
    %v2802 = vunpack.c.l.b16 %v2670
    %v2803 = vunpack.c.l.b16 %v2671
    %v2804 = vunpack.c.l.b16 %v2672
    %v2805 = vunpack.c.l.b16 %v2673
    %v2806 = vunpack.c.l.b16 %v2674
    %v2807 = vunpack.c.l.b16 %v2675
    %v2808 = vunpack.c.l.b16 %v2676
    %v2809 = vunpack.c.l.b16 %v2677
    %v2810 = vunpack.c.l.b16 %v2678
    %v2811 = vunpack.c.l.b16 %v2679
    %v2812 = vunpack.c.l.b16 %v2680
    %v2813 = vunpack.c.l.b16 %v2681
    %v2814 = vunpack.c.l.b16 %v2682
    %v2815 = vunpack.c.l.b16 %v2683
    %v2816 = vunpack.c.l.b16 %v2684
    %v2817 = vunpack.c.l.b16 %v2685
    %v2818 = vunpack.c.l.b16 %v2686
    %v2819 = vunpack.c.l.b16 %v2687
    %v2820 = vunpack.c.l.b16 %v2688
    %v2821 = vunpack.c.l.b16 %v2689
    %v2822 = vunpack.c.l.b16 %v2690
    %v2823 = vunpack.c.l.b16 %v2691
    %v2824 = vpack.c.b16 %v2761, %v2760
    %v2825 = vpack.c.b16 %v2763, %v2762
    %v2826 = vpack.c.b16 %v2765, %v2764
    %v2827 = vpack.c.b16 %v2767, %v2766
    %v2828 = vpack.c.b16 %v2769, %v2768
    %v2829 = vpack.c.b16 %v2771, %v2770
    %v2830 = vpack.c.b16 %v2773, %v2772
    %v2831 = vpack.c.b16 %v2775, %v2774
    %v2832 = vpack.c.b16 %v2777, %v2776
    %v2833 = vpack.c.b16 %v2779, %v2778
    %v2834 = vpack.c.b16 %v2781, %v2780
    %v2835 = vpack.c.b16 %v2783, %v2782
    %v2836 = vpack.c.b16 %v2785, %v2784
    %v2837 = vpack.c.b16 %v2787, %v2786
    %v2838 = vpack.c.b16 %v2789, %v2788
    %v2839 = vpack.c.b16 %v2791, %v2790
    %v2840 = vpack.c.b16 %v2793, %v2792
    %v2841 = vpack.c.b16 %v2795, %v2794
    %v2842 = vpack.c.b16 %v2797, %v2796
    %v2843 = vpack.c.b16 %v2799, %v2798
    %v2844 = vpack.c.b16 %v2801, %v2800
    %v2845 = vpack.c.b16 %v2803, %v2802
    %v2846 = vpack.c.b16 %v2805, %v2804
    %v2847 = vpack.c.b16 %v2807, %v2806
    %v2848 = vpack.c.b16 %v2809, %v2808
    %v2849 = vpack.c.b16 %v2811, %v2810
    %v2850 = vpack.c.b16 %v2813, %v2812
    %v2851 = vpack.c.b16 %v2815, %v2814
    %v2852 = vpack.c.b16 %v2817, %v2816
    %v2853 = vpack.c.b16 %v2819, %v2818
    %v2854 = vpack.c.b16 %v2821, %v2820
    %v2855 = vpack.c.b16 %v2823, %v2822
    %2888 = vmatprep.subr.bf16.mxu0 0
    %2889 = vmatpush1.bf16.msra.mxu0 %v2824
    %2890 = vmatprep.subr.bf16.mxu0 0
    %2891 = vmatpush1.bf16.msra.mxu0 %v2825
    %2892 = vmatprep.subr.bf16.mxu0 0
    %2893 = vmatpush1.bf16.msra.mxu0 %v2826
    %2894 = vmatprep.subr.bf16.mxu0 0
    %2895 = vmatpush1.bf16.msra.mxu0 %v2827
    %2896 = vmatprep.subr.bf16.mxu0 0
    %2897 = vmatpush1.bf16.msra.mxu0 %v2828
    %2898 = vmatprep.subr.bf16.mxu0 0
    %2899 = vmatpush1.bf16.msra.mxu0 %v2829
    %2900 = vmatprep.subr.bf16.mxu0 0
    %2901 = vmatpush1.bf16.msra.mxu0 %v2830
    %2902 = vmatprep.subr.bf16.mxu0 0
    %2903 = vmatpush1.bf16.msra.mxu0 %v2831
    %2904 = vmatprep.subr.bf16.mxu0 0
    %2905 = vmatpush1.bf16.msra.mxu0 %v2832
    %2906 = vmatprep.subr.bf16.mxu0 0
    %2907 = vmatpush1.bf16.msra.mxu0 %v2833
    %2908 = vmatprep.subr.bf16.mxu0 0
    %2909 = vmatpush1.bf16.msra.mxu0 %v2834
    %2910 = vmatprep.subr.bf16.mxu0 0
    %2911 = vmatpush1.bf16.msra.mxu0 %v2835
    %2912 = vmatprep.subr.bf16.mxu0 0
    %2913 = vmatpush1.bf16.msra.mxu0 %v2836
    %2914 = vmatprep.subr.bf16.mxu0 0
    %2915 = vmatpush1.bf16.msra.mxu0 %v2837
    %2916 = vmatprep.subr.bf16.mxu0 0
    %2917 = vmatpush1.bf16.msra.mxu0 %v2838
    %2918 = vmatprep.subr.bf16.mxu0 0
    %2919 = vmatpush1.bf16.msra.mxu0 %v2839
    %2920 = vmatprep.mubr.bf16.mxu0 %v2625
    %2921 = vmatmul.mubr.bf16.gmra.mrb[0].mxu0 %v2624
    %v2922 = vpop.f32.mrb[0].mxu0
    %v2923 = vadd.f32 %v2695, %v2922
    %v2924 = vpop.f32.mrb[0].mxu0
    %v2925 = vpop.f32.mrb[0].mxu0
    %v2926 = vadd.f32 %v2695, %v2925
    %v2927 = vpop.f32.mrb[0].mxu0
    %2928 = vdwg.mxu0
    %2929 = vmatprep.subr.bf16.mxu0 0
    %2930 = vmatpush1.bf16.msra.mxu0 %v2840
    %2931 = vmatprep.subr.bf16.mxu0 0
    %2932 = vmatpush1.bf16.msra.mxu0 %v2841
    %2933 = vmatprep.subr.bf16.mxu0 0
    %2934 = vmatpush1.bf16.msra.mxu0 %v2842
    %2935 = vmatprep.subr.bf16.mxu0 0
    %2936 = vmatpush1.bf16.msra.mxu0 %v2843
    %2937 = vmatprep.subr.bf16.mxu0 0
    %2938 = vmatpush1.bf16.msra.mxu0 %v2844
    %2939 = vmatprep.subr.bf16.mxu0 0
    %2940 = vmatpush1.bf16.msra.mxu0 %v2845
    %2941 = vmatprep.subr.bf16.mxu0 0
    %2942 = vmatpush1.bf16.msra.mxu0 %v2846
    %2943 = vmatprep.subr.bf16.mxu0 0
    %2944 = vmatpush1.bf16.msra.mxu0 %v2847
    %2945 = vmatprep.subr.bf16.mxu0 0
    %2946 = vmatpush1.bf16.msra.mxu0 %v2848
    %2947 = vmatprep.subr.bf16.mxu0 0
    %2948 = vmatpush1.bf16.msra.mxu0 %v2849
    %2949 = vmatprep.subr.bf16.mxu0 0
    %2950 = vmatpush1.bf16.msra.mxu0 %v2850
    %2951 = vmatprep.subr.bf16.mxu0 0
    %2952 = vmatpush1.bf16.msra.mxu0 %v2851
    %2953 = vmatprep.subr.bf16.mxu0 0
    %2954 = vmatpush1.bf16.msra.mxu0 %v2852
    %2955 = vmatprep.subr.bf16.mxu0 0
    %2956 = vmatpush1.bf16.msra.mxu0 %v2853
    %2957 = vmatprep.subr.bf16.mxu0 0
    %2958 = vmatpush1.bf16.msra.mxu0 %v2854
    %2959 = vmatprep.subr.bf16.mxu0 0
    %2960 = vmatpush1.bf16.msra.mxu0 %v2855
    %2961 = vmatprep.mubr.bf16.mxu0 %v2627
    %2962 = vmatmul.mubr.bf16.gmra.mrb[0].mxu0 %v2626
    %v2963 = vpop.f32.mrb[0].mxu0
    %v2964 = vadd.f32 %v2923, %v2963
    %v2965 = vpop.f32.mrb[0].mxu0
    %v2966 = vpop.f32.mrb[0].mxu0
    %v2967 = vadd.f32 %v2926, %v2966
    %v2968 = vpop.f32.mrb[0].mxu0
    %2969 = vdwg.mxu0
    %v2970 = vpack.c.bf16 %v2967, %v2964
    %v2971 = vtanh.bf16.pop %v2970
    %v2972 = vld [vmem:[#allocation17] sm:$0xf]
    %v2973 = vld [vmem:[#allocation17 + $0x4] sm:$0xf]
    %v2974 = vld [vmem:[#allocation17 + $0x8] sm:$0xf]
    %v2975 = vld [vmem:[#allocation17 + $0xc] sm:$0xf]
    %v2976 = vld [vmem:[#allocation17 + $0x10] sm:$0xf]
    %v2977 = vld [vmem:[#allocation17 + $0x14] sm:$0xf]
    %v2978 = vld [vmem:[#allocation17 + $0x18] sm:$0xf]
    %v2979 = vld [vmem:[#allocation17 + $0x1c] sm:$0xf]
    %v2980 = vld [vmem:[#allocation17 + $0x20] sm:$0xf]
    %v2981 = vld [vmem:[#allocation17 + $0x24] sm:$0xf]
    %v2982 = vld [vmem:[#allocation17 + $0x28] sm:$0xf]
    %v2983 = vld [vmem:[#allocation17 + $0x2c] sm:$0xf]
    %v2984 = vld [vmem:[#allocation17 + $0x30] sm:$0xf]
    %v2985 = vld [vmem:[#allocation17 + $0x34] sm:$0xf]
    %v2986 = vld [vmem:[#allocation17 + $0x38] sm:$0xf]
    %v2987 = vld [vmem:[#allocation17 + $0x3c] sm:$0xf]
    %v2988 = vlaneseq
    %v2989 = vshrl.u32 %v2988, 7
    %v2990 = vsub.s32 6, %v2989
    %v2991 = vrot.slane %v176, %v2990
    %v3008 = vunpack.c.l.b16 %v2972
    %v3009 = vunpack.c.l.b16 %v2973
    %v3010 = vunpack.c.l.b16 %v2974
    %v3011 = vunpack.c.l.b16 %v2975
    %v3012 = vunpack.c.l.b16 %v2976
    %v3013 = vunpack.c.l.b16 %v2977
    %v3014 = vunpack.c.l.b16 %v2978
    %v3015 = vunpack.c.l.b16 %v2979
    %v3016 = vunpack.c.l.b16 %v2980
    %v3017 = vunpack.c.l.b16 %v2981
    %v3018 = vunpack.c.l.b16 %v2982
    %v3019 = vunpack.c.l.b16 %v2983
    %v3020 = vunpack.c.l.b16 %v2984
    %v3021 = vunpack.c.l.b16 %v2985
    %v3022 = vunpack.c.l.b16 %v2986
    %v3023 = vunpack.c.l.b16 %v2987
    %v3024 = vpack.c.b16 %v3009, %v3008
    %v3025 = vpack.c.b16 %v3011, %v3010
    %v3026 = vpack.c.b16 %v3013, %v3012
    %v3027 = vpack.c.b16 %v3015, %v3014
    %v3028 = vpack.c.b16 %v3017, %v3016
    %v3029 = vpack.c.b16 %v3019, %v3018
    %v3030 = vpack.c.b16 %v3021, %v3020
    %v3031 = vpack.c.b16 %v3023, %v3022
    %3040 = vmatprep.subr.bf16.mxu0 0
    %3041 = vmatpush1.bf16.msra.mxu0 %v3024
    %3042 = vmatprep.subr.bf16.mxu0 0
    %3043 = vmatpush1.bf16.msra.mxu0 %v3025
    %3044 = vmatprep.subr.bf16.mxu0 0
    %3045 = vmatpush1.bf16.msra.mxu0 %v3026
    %3046 = vmatprep.subr.bf16.mxu0 0
    %3047 = vmatpush1.bf16.msra.mxu0 %v3027
    %3048 = vmatprep.subr.bf16.mxu0 0
    %3049 = vmatpush1.bf16.msra.mxu0 %v3028
    %3050 = vmatprep.subr.bf16.mxu0 0
    %3051 = vmatpush1.bf16.msra.mxu0 %v3029
    %3052 = vmatprep.subr.bf16.mxu0 0
    %3053 = vmatpush1.bf16.msra.mxu0 %v3030
    %3054 = vmatprep.subr.bf16.mxu0 0
    %3055 = vmatpush1.bf16.msra.mxu0 %v3031
    %3056 = vmatprep.subr.bf16.mxu0 0
    %3057 = vmatpush1.bf16.msra.mxu0 0
    %3058 = vmatprep.subr.bf16.mxu0 0
    %3059 = vmatpush1.bf16.msra.mxu0 0
    %3060 = vmatprep.subr.bf16.mxu0 0
    %3061 = vmatpush1.bf16.msra.mxu0 0
    %3062 = vmatprep.subr.bf16.mxu0 0
    %3063 = vmatpush1.bf16.msra.mxu0 0
    %3064 = vmatprep.subr.bf16.mxu0 0
    %3065 = vmatpush1.bf16.msra.mxu0 0
    %3066 = vmatprep.subr.bf16.mxu0 0
    %3067 = vmatpush1.bf16.msra.mxu0 0
    %3068 = vmatprep.subr.bf16.mxu0 0
    %3069 = vmatpush1.bf16.msra.mxu0 0
    %3070 = vmatprep.subr.bf16.mxu0 0
    %3071 = vmatpush1.bf16.msra.mxu0 0
    %3072 = vmatprep.mubr.bf16.mxu0 0
    %3073 = vmatmul.mubr.bf16.gmra.mrb[0].mxu0 %v2971
    %v3074 = vpop.f32.mrb[0].mxu0
    %v3075 = vadd.f32 %v2991, %v3074
    %v3076 = vpop.f32.mrb[0].mxu0
    %v3077 = vpop.f32.mrb[0].mxu0
    %v3078 = vadd.f32 %v2991, %v3077
    %v3079 = vpop.f32.mrb[0].mxu0
    %3080 = vdwg.mxu0
    %v3081 = vunpack.c.l.bf16 %v1860
    %v3082 = vunpack.c.h.bf16 %v1860
    %v3083 = vadd.f32 %v3075, %v3081
    %v3084 = vadd.f32 %v3078, %v3082
    %3085 = vst [vmem:[#allocation19] sm:$0xff] %v3083
    %3086 = vst [vmem:[#allocation19 + $0x8] sm:$0xff] %v3084
    // Predicated region
    $region86: #{tpu_custom_call.1} parent=1 // pred_check
      _
    $region87: #{tpu_custom_call.1} parent=1 // pred_check_branch
      %3088 = sbr.rel (0) target = $region89
    $region88: #{tpu_custom_call.1} parent=1 // pred_region
      %s3090 = ssub.s32 256, 256
      %3091 = vsyncadd [#allocation4], %s3090
      %s3092 = sshll.u32 [#allocation19], 4
      %s3093 = int_to_ptr.vmem [resolvable:$true] %s3092
      %3098 = dma.vmem_to_hbm [thread:$0]  %s3093, 256, %s11, [#allocation4], 128, 128, 8
    $region89: #{tpu_custom_call.1} parent=1 // pred_fallthru
      _
    // Predicated region
    $region90: #{tpu_custom_call.1} parent=1 // pred_check
      _
    $region91: #{tpu_custom_call.1} parent=1 // pred_check_branch
      %3100 = sbr.rel (0) target = $region93
    $region92: #{tpu_custom_call.1} parent=1 // pred_region
      %3101 = dma.done [#allocation4], 256
    $region93: #{tpu_custom_call.1} parent=1 // pred_fallthru
      _
    %3102 = vsyncpa [#allocation3], 1
    %3103 = vsyncpa [#allocation6], 1
    %3104 = vsyncpa [#allocation9], 1
    %3105 = vsyncpa [#allocation12], 1
    %3106 = vsyncpa [#allocation15], 1
    %3107 = vsyncpa [#allocation18], 1
    %3108 = vsyncpa [#allocation4], 1

</llo_original>
